<compile_context>
chip_gen: v5e
topology: v5e:2x2
jax: 0.10.0
libtpu: 0.0.40
codegen_flags: <defaults>
</compile_context>

<pallas_src>
import functools

import jax
import jax.numpy as jnp
from jax import lax
from jax.experimental import pallas as pl
from jax.experimental.pallas import tpu as pltpu


# ---------------------------------------------------------------------------
# Fused Key+Value 3x3 "same" convolution kernel (stride 1).
# ---------------------------------------------------------------------------
def _keyvalue_kernel(x_ref, wk_ref, bk_ref, wv_ref, bv_ref, k_ref, v_ref, *,
                     TH, W):
    # x_ref : (1, H+2, W+2, Cin)   zero-padded input (whole image, one batch)
    # wk_ref: (3, 3, Cin, Kd)      bk_ref: (1, Kd)
    # wv_ref: (3, 3, Cin, Vd)      bv_ref: (1, Vd)
    # k_ref : (1, TH, W, Kd)       v_ref : (1, TH, W, Vd)
    Kd = k_ref.shape[-1]
    Vd = v_ref.shape[-1]
    r0 = pl.multiple_of(pl.program_id(1) * TH, TH)

    # Bias-initialized f32 accumulators (broadcast hoisted out of the loop).
    acc_k = jnp.broadcast_to(bk_ref[0][None, None, :], (TH, W, Kd)).astype(jnp.float32)
    acc_v = jnp.broadcast_to(bv_ref[0][None, None, :], (TH, W, Vd)).astype(jnp.float32)

    dn = (((2,), (0,)), ((), ()))
    for dx in range(3):
        # One sublane-shifted materialization per dx (3 total instead of 9).
        xs = x_ref[0, pl.ds(r0, TH + 2), dx:dx + W, :]          # (TH+2, W, Cin)
        for dy in range(3):
            patch = xs[dy:dy + TH]                              # cheap leading-dim slice
            acc_k = acc_k + lax.dot_general(
                patch, wk_ref[dy, dx], dn, preferred_element_type=jnp.float32)
            acc_v = acc_v + lax.dot_general(
                patch, wv_ref[dy, dx], dn, preferred_element_type=jnp.float32)

    k_ref[...] = acc_k[None].astype(k_ref.dtype)
    v_ref[...] = acc_v[None].astype(v_ref.dtype)


def _pick_tile_h(H, max_rows=8):
    """Largest row-tile <= max_rows that evenly divides H."""
    for th in range(min(H, max_rows), 0, -1):
        if H % th == 0:
            return th
    return H


def keyvalue_nhwc(x_nhwc, wk, bk, wv, bv):
    """Fused Key/Value 3x3 conv.  x: (N,H,W,Cin); wk/wv: (3,3,Cin,Cout)."""
    N, H, W, Cin = x_nhwc.shape
    Kd = wk.shape[-1]
    Vd = wv.shape[-1]
    TH = _pick_tile_h(H)
    nH = H // TH

    x_pad = jnp.pad(x_nhwc, ((0, 0), (1, 1), (1, 1), (0, 0)))
    Hp, Wp = H + 2, W + 2
    bk2 = bk.reshape(1, Kd)
    bv2 = bv.reshape(1, Vd)

    kernel = functools.partial(_keyvalue_kernel, TH=TH, W=W)
    itemsize = x_nhwc.dtype.itemsize
    cost = pl.CostEstimate(
        flops=2 * N * H * W * 9 * Cin * (Kd + Vd),
        transcendentals=0,
        bytes_accessed=itemsize * (N * Hp * Wp * Cin
                                   + 9 * Cin * (Kd + Vd)
                                   + N * H * W * (Kd + Vd)),
    )

    key, val = pl.pallas_call(
        kernel,
        out_shape=(jax.ShapeDtypeStruct((N, H, W, Kd), x_nhwc.dtype),
                   jax.ShapeDtypeStruct((N, H, W, Vd), x_nhwc.dtype)),
        grid_spec=pltpu.PrefetchScalarGridSpec(
            num_scalar_prefetch=0,
            grid=(N, nH),
            in_specs=[
                # Whole padded image per batch index; the block index does not
                # depend on the row-tile axis, so it is DMA'd once per image
                # and reused by every row tile and by both convolutions.
                pl.BlockSpec((1, Hp, Wp, Cin), lambda n, h: (n, 0, 0, 0)),
                pl.BlockSpec((3, 3, Cin, Kd), lambda n, h: (0, 0, 0, 0)),
                pl.BlockSpec((1, Kd), lambda n, h: (0, 0)),
                pl.BlockSpec((3, 3, Cin, Vd), lambda n, h: (0, 0, 0, 0)),
                pl.BlockSpec((1, Vd), lambda n, h: (0, 0)),
            ],
            out_specs=[
                pl.BlockSpec((1, TH, W, Kd), lambda n, h: (n, h, 0, 0)),
                pl.BlockSpec((1, TH, W, Vd), lambda n, h: (n, h, 0, 0)),
            ],
        ),
        compiler_params=pltpu.CompilerParams(
            dimension_semantics=("parallel", "parallel")),
        cost_estimate=cost,
    )(x_pad, wk, bk2, wv, bv2)
    return key, val


# ---------------------------------------------------------------------------
# Public NCHW / OIHW wrapper (mirrors PyTorch KeyValue.forward).
# ---------------------------------------------------------------------------
def keyvalue_forward(params, x_nchw):
    x = jnp.transpose(x_nchw, (0, 2, 3, 1))                 # NCHW -> NHWC
    wk = jnp.transpose(params["key_w"], (2, 3, 1, 0))       # OIHW -> HWIO
    wv = jnp.transpose(params["value_w"], (2, 3, 1, 0))
    k, v = keyvalue_nhwc(x, wk, params["key_b"], wv, params["value_b"])
    return (jnp.transpose(k, (0, 3, 1, 2)),                 # NHWC -> NCHW
            jnp.transpose(v, (0, 3, 1, 2)))


def init_params(key, indim, keydim, valdim, dtype=jnp.float32):
    ks = jax.random.split(key, 4)
    # PyTorch nn.Conv2d layout: weight OIHW, bias (O,)
    return {
        "key_w": 0.05 * jax.random.normal(ks[0], (keydim, indim, 3, 3), dtype),
        "key_b": 0.05 * jax.random.normal(ks[1], (keydim,), dtype),
        "value_w": 0.05 * jax.random.normal(ks[2], (valdim, indim, 3, 3), dtype),
        "value_b": 0.05 * jax.random.normal(ks[3], (valdim,), dtype),
    }


if __name__ == "__main__":
    key = jax.random.PRNGKey(0)
    kx, kp = jax.random.split(key)

    N, indim, keydim, valdim = 2, 8, 4, 8
    H, W = 16, 16

    x = jax.random.normal(kx, (N, indim, H, W), jnp.float32)
    params = init_params(kp, indim, keydim, valdim)

    k, v = jax.jit(keyvalue_forward)(params, x)
    k = jax.block_until_ready(k)
    v = jax.block_until_ready(v)
    assert k.shape == (N, keydim, H, W), k.shape
    assert v.shape == (N, valdim, H, W), v.shape
    print("KERNEL_OK")
</pallas_src>

<mosaic_0001>
module attributes {stable_mosaic.version = 11 : i64} {
  func.func @_keyvalue_kernel(%arg0: i32, %arg1: i32, %arg2: memref<1x18x18x8xf32, #tpu.memory_space<vmem>>, %arg3: memref<3x3x8x4xf32, #tpu.memory_space<vmem>>, %arg4: memref<1x4xf32, #tpu.memory_space<vmem>>, %arg5: memref<3x3x8x8xf32, #tpu.memory_space<vmem>>, %arg6: memref<1x8xf32, #tpu.memory_space<vmem>>, %arg7: memref<1x8x16x4xf32, #tpu.memory_space<vmem>>, %arg8: memref<1x8x16x8xf32, #tpu.memory_space<vmem>>) attributes {dimension_semantics = [#tpu.dimension_semantics<parallel>, #tpu.dimension_semantics<parallel>], iteration_bounds = array<i64: 2, 2>, scalar_prefetch = 0 : i64, scratch_operands = 0 : i64, tpu.core_type = #tpu.core_type<tc>, window_params = [{transform_indices = @transform_0, window_bounds = array<i64: 1, 18, 18, 8>}, {pipeline_mode = #tpu.pipeline_mode<synchronous>, transform_indices = @transform_1, window_bounds = array<i64: 3, 3, 8, 4>}, {pipeline_mode = #tpu.pipeline_mode<synchronous>, transform_indices = @transform_2, window_bounds = array<i64: 1, 4>}, {pipeline_mode = #tpu.pipeline_mode<synchronous>, transform_indices = @transform_3, window_bounds = array<i64: 3, 3, 8, 8>}, {pipeline_mode = #tpu.pipeline_mode<synchronous>, transform_indices = @transform_4, window_bounds = array<i64: 1, 8>}, {transform_indices = @transform_5, window_bounds = array<i64: 1, 8, 16, 4>}, {transform_indices = @transform_6, window_bounds = array<i64: 1, 8, 16, 8>}]} {
    %c8_i32 = arith.constant 8 : i32
    %0 = arith.muli %arg1, %c8_i32 : i32
    %1 = tpu.assume_multiple %0, 8 : i32
    %c0 = arith.constant 0 : index
    %c0_0 = arith.constant 0 : index
    %2 = vector.load %arg4[%c0, %c0_0] : memref<1x4xf32, #tpu.memory_space<vmem>>, vector<1x4xf32>
    %3 = vector.shape_cast %2 : vector<1x4xf32> to vector<4xf32>
    %4 = vector.shape_cast %3 : vector<4xf32> to vector<1x1x4xf32>
    %5 = vector.shape_cast %4 : vector<1x1x4xf32> to vector<1x1x4xf32>
    %6 = vector.broadcast %5 : vector<1x1x4xf32> to vector<8x16x4xf32>
    %c0_1 = arith.constant 0 : index
    %c0_2 = arith.constant 0 : index
    %7 = vector.load %arg6[%c0_1, %c0_2] : memref<1x8xf32, #tpu.memory_space<vmem>>, vector<1x8xf32>
    %8 = vector.shape_cast %7 : vector<1x8xf32> to vector<8xf32>
    %9 = vector.shape_cast %8 : vector<8xf32> to vector<1x1x8xf32>
    %10 = vector.shape_cast %9 : vector<1x1x8xf32> to vector<1x1x8xf32>
    %11 = vector.broadcast %10 : vector<1x1x8xf32> to vector<8x16x8xf32>
    %c0_3 = arith.constant 0 : index
    %12 = arith.index_cast %1 : i32 to index
    %c0_4 = arith.constant 0 : index
    %c0_5 = arith.constant 0 : index
    %13 = vector.load %arg2[%c0_3, %12, %c0_4, %c0_5] : memref<1x18x18x8xf32, #tpu.memory_space<vmem>>, vector<1x10x16x8xf32>
    %14 = vector.shape_cast %13 : vector<1x10x16x8xf32> to vector<10x16x8xf32>
    %15 = vector.extract_strided_slice %14 {offsets = [0, 0, 0], sizes = [8, 16, 8], strides = [1, 1, 1]} : vector<10x16x8xf32> to vector<8x16x8xf32>
    %c0_6 = arith.constant 0 : index
    %c0_7 = arith.constant 0 : index
    %c0_8 = arith.constant 0 : index
    %c0_9 = arith.constant 0 : index
    %16 = vector.load %arg3[%c0_6, %c0_7, %c0_8, %c0_9] : memref<3x3x8x4xf32, #tpu.memory_space<vmem>>, vector<1x1x8x4xf32>
    %17 = vector.shape_cast %16 : vector<1x1x8x4xf32> to vector<8x4xf32>
    %cst = arith.constant dense<0.000000e+00> : vector<8x16x4xf32>
    %18 = tpu.matmul %15, %17, %cst {dimension_numbers = #tpu.dot_dimension_numbers<[2], [0], [0, 1], [1], [0, 0, 0, 1, 1, 1], [], []>} : vector<8x16x8xf32>, vector<8x4xf32>, vector<8x16x4xf32> -> vector<8x16x4xf32>
    %19 = arith.addf %6, %18 : vector<8x16x4xf32>
    %c0_10 = arith.constant 0 : index
    %c0_11 = arith.constant 0 : index
    %c0_12 = arith.constant 0 : index
    %c0_13 = arith.constant 0 : index
    %20 = vector.load %arg5[%c0_10, %c0_11, %c0_12, %c0_13] : memref<3x3x8x8xf32, #tpu.memory_space<vmem>>, vector<1x1x8x8xf32>
    %21 = vector.shape_cast %20 : vector<1x1x8x8xf32> to vector<8x8xf32>
    %cst_14 = arith.constant dense<0.000000e+00> : vector<8x16x8xf32>
    %22 = tpu.matmul %15, %21, %cst_14 {dimension_numbers = #tpu.dot_dimension_numbers<[2], [0], [0, 1], [1], [0, 0, 0, 1, 1, 1], [], []>} : vector<8x16x8xf32>, vector<8x8xf32>, vector<8x16x8xf32> -> vector<8x16x8xf32>
    %23 = arith.addf %11, %22 : vector<8x16x8xf32>
    %24 = vector.extract_strided_slice %14 {offsets = [1, 0, 0], sizes = [8, 16, 8], strides = [1, 1, 1]} : vector<10x16x8xf32> to vector<8x16x8xf32>
    %c1 = arith.constant 1 : index
    %c0_15 = arith.constant 0 : index
    %c0_16 = arith.constant 0 : index
    %c0_17 = arith.constant 0 : index
    %25 = vector.load %arg3[%c1, %c0_15, %c0_16, %c0_17] : memref<3x3x8x4xf32, #tpu.memory_space<vmem>>, vector<1x1x8x4xf32>
    %26 = vector.shape_cast %25 : vector<1x1x8x4xf32> to vector<8x4xf32>
    %cst_18 = arith.constant dense<0.000000e+00> : vector<8x16x4xf32>
    %27 = tpu.matmul %24, %26, %cst_18 {dimension_numbers = #tpu.dot_dimension_numbers<[2], [0], [0, 1], [1], [0, 0, 0, 1, 1, 1], [], []>} : vector<8x16x8xf32>, vector<8x4xf32>, vector<8x16x4xf32> -> vector<8x16x4xf32>
    %28 = arith.addf %19, %27 : vector<8x16x4xf32>
    %c1_19 = arith.constant 1 : index
    %c0_20 = arith.constant 0 : index
    %c0_21 = arith.constant 0 : index
    %c0_22 = arith.constant 0 : index
    %29 = vector.load %arg5[%c1_19, %c0_20, %c0_21, %c0_22] : memref<3x3x8x8xf32, #tpu.memory_space<vmem>>, vector<1x1x8x8xf32>
    %30 = vector.shape_cast %29 : vector<1x1x8x8xf32> to vector<8x8xf32>
    %cst_23 = arith.constant dense<0.000000e+00> : vector<8x16x8xf32>
    %31 = tpu.matmul %24, %30, %cst_23 {dimension_numbers = #tpu.dot_dimension_numbers<[2], [0], [0, 1], [1], [0, 0, 0, 1, 1, 1], [], []>} : vector<8x16x8xf32>, vector<8x8xf32>, vector<8x16x8xf32> -> vector<8x16x8xf32>
    %32 = arith.addf %23, %31 : vector<8x16x8xf32>
    %33 = vector.extract_strided_slice %14 {offsets = [2, 0, 0], sizes = [8, 16, 8], strides = [1, 1, 1]} : vector<10x16x8xf32> to vector<8x16x8xf32>
    %c2 = arith.constant 2 : index
    %c0_24 = arith.constant 0 : index
    %c0_25 = arith.constant 0 : index
    %c0_26 = arith.constant 0 : index
    %34 = vector.load %arg3[%c2, %c0_24, %c0_25, %c0_26] : memref<3x3x8x4xf32, #tpu.memory_space<vmem>>, vector<1x1x8x4xf32>
    %35 = vector.shape_cast %34 : vector<1x1x8x4xf32> to vector<8x4xf32>
    %cst_27 = arith.constant dense<0.000000e+00> : vector<8x16x4xf32>
    %36 = tpu.matmul %33, %35, %cst_27 {dimension_numbers = #tpu.dot_dimension_numbers<[2], [0], [0, 1], [1], [0, 0, 0, 1, 1, 1], [], []>} : vector<8x16x8xf32>, vector<8x4xf32>, vector<8x16x4xf32> -> vector<8x16x4xf32>
    %37 = arith.addf %28, %36 : vector<8x16x4xf32>
    %c2_28 = arith.constant 2 : index
    %c0_29 = arith.constant 0 : index
    %c0_30 = arith.constant 0 : index
    %c0_31 = arith.constant 0 : index
    %38 = vector.load %arg5[%c2_28, %c0_29, %c0_30, %c0_31] : memref<3x3x8x8xf32, #tpu.memory_space<vmem>>, vector<1x1x8x8xf32>
    %39 = vector.shape_cast %38 : vector<1x1x8x8xf32> to vector<8x8xf32>
    %cst_32 = arith.constant dense<0.000000e+00> : vector<8x16x8xf32>
    %40 = tpu.matmul %33, %39, %cst_32 {dimension_numbers = #tpu.dot_dimension_numbers<[2], [0], [0, 1], [1], [0, 0, 0, 1, 1, 1], [], []>} : vector<8x16x8xf32>, vector<8x8xf32>, vector<8x16x8xf32> -> vector<8x16x8xf32>
    %41 = arith.addf %32, %40 : vector<8x16x8xf32>
    %c0_33 = arith.constant 0 : index
    %42 = arith.index_cast %1 : i32 to index
    %c1_34 = arith.constant 1 : index
    %c0_35 = arith.constant 0 : index
    %43 = vector.load %arg2[%c0_33, %42, %c1_34, %c0_35] : memref<1x18x18x8xf32, #tpu.memory_space<vmem>>, vector<1x10x16x8xf32>
    %44 = vector.shape_cast %43 : vector<1x10x16x8xf32> to vector<10x16x8xf32>
    %45 = vector.extract_strided_slice %44 {offsets = [0, 0, 0], sizes = [8, 16, 8], strides = [1, 1, 1]} : vector<10x16x8xf32> to vector<8x16x8xf32>
    %c0_36 = arith.constant 0 : index
    %c1_37 = arith.constant 1 : index
    %c0_38 = arith.constant 0 : index
    %c0_39 = arith.constant 0 : index
    %46 = vector.load %arg3[%c0_36, %c1_37, %c0_38, %c0_39] : memref<3x3x8x4xf32, #tpu.memory_space<vmem>>, vector<1x1x8x4xf32>
    %47 = vector.shape_cast %46 : vector<1x1x8x4xf32> to vector<8x4xf32>
    %cst_40 = arith.constant dense<0.000000e+00> : vector<8x16x4xf32>
    %48 = tpu.matmul %45, %47, %cst_40 {dimension_numbers = #tpu.dot_dimension_numbers<[2], [0], [0, 1], [1], [0, 0, 0, 1, 1, 1], [], []>} : vector<8x16x8xf32>, vector<8x4xf32>, vector<8x16x4xf32> -> vector<8x16x4xf32>
    %49 = arith.addf %37, %48 : vector<8x16x4xf32>
    %c0_41 = arith.constant 0 : index
    %c1_42 = arith.constant 1 : index
    %c0_43 = arith.constant 0 : index
    %c0_44 = arith.constant 0 : index
    %50 = vector.load %arg5[%c0_41, %c1_42, %c0_43, %c0_44] : memref<3x3x8x8xf32, #tpu.memory_space<vmem>>, vector<1x1x8x8xf32>
    %51 = vector.shape_cast %50 : vector<1x1x8x8xf32> to vector<8x8xf32>
    %cst_45 = arith.constant dense<0.000000e+00> : vector<8x16x8xf32>
    %52 = tpu.matmul %45, %51, %cst_45 {dimension_numbers = #tpu.dot_dimension_numbers<[2], [0], [0, 1], [1], [0, 0, 0, 1, 1, 1], [], []>} : vector<8x16x8xf32>, vector<8x8xf32>, vector<8x16x8xf32> -> vector<8x16x8xf32>
    %53 = arith.addf %41, %52 : vector<8x16x8xf32>
    %54 = vector.extract_strided_slice %44 {offsets = [1, 0, 0], sizes = [8, 16, 8], strides = [1, 1, 1]} : vector<10x16x8xf32> to vector<8x16x8xf32>
    %c1_46 = arith.constant 1 : index
    %c1_47 = arith.constant 1 : index
    %c0_48 = arith.constant 0 : index
    %c0_49 = arith.constant 0 : index
    %55 = vector.load %arg3[%c1_46, %c1_47, %c0_48, %c0_49] : memref<3x3x8x4xf32, #tpu.memory_space<vmem>>, vector<1x1x8x4xf32>
    %56 = vector.shape_cast %55 : vector<1x1x8x4xf32> to vector<8x4xf32>
    %cst_50 = arith.constant dense<0.000000e+00> : vector<8x16x4xf32>
    %57 = tpu.matmul %54, %56, %cst_50 {dimension_numbers = #tpu.dot_dimension_numbers<[2], [0], [0, 1], [1], [0, 0, 0, 1, 1, 1], [], []>} : vector<8x16x8xf32>, vector<8x4xf32>, vector<8x16x4xf32> -> vector<8x16x4xf32>
    %58 = arith.addf %49, %57 : vector<8x16x4xf32>
    %c1_51 = arith.constant 1 : index
    %c1_52 = arith.constant 1 : index
    %c0_53 = arith.constant 0 : index
    %c0_54 = arith.constant 0 : index
    %59 = vector.load %arg5[%c1_51, %c1_52, %c0_53, %c0_54] : memref<3x3x8x8xf32, #tpu.memory_space<vmem>>, vector<1x1x8x8xf32>
    %60 = vector.shape_cast %59 : vector<1x1x8x8xf32> to vector<8x8xf32>
    %cst_55 = arith.constant dense<0.000000e+00> : vector<8x16x8xf32>
    %61 = tpu.matmul %54, %60, %cst_55 {dimension_numbers = #tpu.dot_dimension_numbers<[2], [0], [0, 1], [1], [0, 0, 0, 1, 1, 1], [], []>} : vector<8x16x8xf32>, vector<8x8xf32>, vector<8x16x8xf32> -> vector<8x16x8xf32>
    %62 = arith.addf %53, %61 : vector<8x16x8xf32>
    %63 = vector.extract_strided_slice %44 {offsets = [2, 0, 0], sizes = [8, 16, 8], strides = [1, 1, 1]} : vector<10x16x8xf32> to vector<8x16x8xf32>
    %c2_56 = arith.constant 2 : index
    %c1_57 = arith.constant 1 : index
    %c0_58 = arith.constant 0 : index
    %c0_59 = arith.constant 0 : index
    %64 = vector.load %arg3[%c2_56, %c1_57, %c0_58, %c0_59] : memref<3x3x8x4xf32, #tpu.memory_space<vmem>>, vector<1x1x8x4xf32>
    %65 = vector.shape_cast %64 : vector<1x1x8x4xf32> to vector<8x4xf32>
    %cst_60 = arith.constant dense<0.000000e+00> : vector<8x16x4xf32>
    %66 = tpu.matmul %63, %65, %cst_60 {dimension_numbers = #tpu.dot_dimension_numbers<[2], [0], [0, 1], [1], [0, 0, 0, 1, 1, 1], [], []>} : vector<8x16x8xf32>, vector<8x4xf32>, vector<8x16x4xf32> -> vector<8x16x4xf32>
    %67 = arith.addf %58, %66 : vector<8x16x4xf32>
    %c2_61 = arith.constant 2 : index
    %c1_62 = arith.constant 1 : index
    %c0_63 = arith.constant 0 : index
    %c0_64 = arith.constant 0 : index
    %68 = vector.load %arg5[%c2_61, %c1_62, %c0_63, %c0_64] : memref<3x3x8x8xf32, #tpu.memory_space<vmem>>, vector<1x1x8x8xf32>
    %69 = vector.shape_cast %68 : vector<1x1x8x8xf32> to vector<8x8xf32>
    %cst_65 = arith.constant dense<0.000000e+00> : vector<8x16x8xf32>
    %70 = tpu.matmul %63, %69, %cst_65 {dimension_numbers = #tpu.dot_dimension_numbers<[2], [0], [0, 1], [1], [0, 0, 0, 1, 1, 1], [], []>} : vector<8x16x8xf32>, vector<8x8xf32>, vector<8x16x8xf32> -> vector<8x16x8xf32>
    %71 = arith.addf %62, %70 : vector<8x16x8xf32>
    %c0_66 = arith.constant 0 : index
    %72 = arith.index_cast %1 : i32 to index
    %c2_67 = arith.constant 2 : index
    %c0_68 = arith.constant 0 : index
    %73 = vector.load %arg2[%c0_66, %72, %c2_67, %c0_68] : memref<1x18x18x8xf32, #tpu.memory_space<vmem>>, vector<1x10x16x8xf32>
    %74 = vector.shape_cast %73 : vector<1x10x16x8xf32> to vector<10x16x8xf32>
    %75 = vector.extract_strided_slice %74 {offsets = [0, 0, 0], sizes = [8, 16, 8], strides = [1, 1, 1]} : vector<10x16x8xf32> to vector<8x16x8xf32>
    %c0_69 = arith.constant 0 : index
    %c2_70 = arith.constant 2 : index
    %c0_71 = arith.constant 0 : index
    %c0_72 = arith.constant 0 : index
    %76 = vector.load %arg3[%c0_69, %c2_70, %c0_71, %c0_72] : memref<3x3x8x4xf32, #tpu.memory_space<vmem>>, vector<1x1x8x4xf32>
    %77 = vector.shape_cast %76 : vector<1x1x8x4xf32> to vector<8x4xf32>
    %cst_73 = arith.constant dense<0.000000e+00> : vector<8x16x4xf32>
    %78 = tpu.matmul %75, %77, %cst_73 {dimension_numbers = #tpu.dot_dimension_numbers<[2], [0], [0, 1], [1], [0, 0, 0, 1, 1, 1], [], []>} : vector<8x16x8xf32>, vector<8x4xf32>, vector<8x16x4xf32> -> vector<8x16x4xf32>
    %79 = arith.addf %67, %78 : vector<8x16x4xf32>
    %c0_74 = arith.constant 0 : index
    %c2_75 = arith.constant 2 : index
    %c0_76 = arith.constant 0 : index
    %c0_77 = arith.constant 0 : index
    %80 = vector.load %arg5[%c0_74, %c2_75, %c0_76, %c0_77] : memref<3x3x8x8xf32, #tpu.memory_space<vmem>>, vector<1x1x8x8xf32>
    %81 = vector.shape_cast %80 : vector<1x1x8x8xf32> to vector<8x8xf32>
    %cst_78 = arith.constant dense<0.000000e+00> : vector<8x16x8xf32>
    %82 = tpu.matmul %75, %81, %cst_78 {dimension_numbers = #tpu.dot_dimension_numbers<[2], [0], [0, 1], [1], [0, 0, 0, 1, 1, 1], [], []>} : vector<8x16x8xf32>, vector<8x8xf32>, vector<8x16x8xf32> -> vector<8x16x8xf32>
    %83 = arith.addf %71, %82 : vector<8x16x8xf32>
    %84 = vector.extract_strided_slice %74 {offsets = [1, 0, 0], sizes = [8, 16, 8], strides = [1, 1, 1]} : vector<10x16x8xf32> to vector<8x16x8xf32>
    %c1_79 = arith.constant 1 : index
    %c2_80 = arith.constant 2 : index
    %c0_81 = arith.constant 0 : index
    %c0_82 = arith.constant 0 : index
    %85 = vector.load %arg3[%c1_79, %c2_80, %c0_81, %c0_82] : memref<3x3x8x4xf32, #tpu.memory_space<vmem>>, vector<1x1x8x4xf32>
    %86 = vector.shape_cast %85 : vector<1x1x8x4xf32> to vector<8x4xf32>
    %cst_83 = arith.constant dense<0.000000e+00> : vector<8x16x4xf32>
    %87 = tpu.matmul %84, %86, %cst_83 {dimension_numbers = #tpu.dot_dimension_numbers<[2], [0], [0, 1], [1], [0, 0, 0, 1, 1, 1], [], []>} : vector<8x16x8xf32>, vector<8x4xf32>, vector<8x16x4xf32> -> vector<8x16x4xf32>
    %88 = arith.addf %79, %87 : vector<8x16x4xf32>
    %c1_84 = arith.constant 1 : index
    %c2_85 = arith.constant 2 : index
    %c0_86 = arith.constant 0 : index
    %c0_87 = arith.constant 0 : index
    %89 = vector.load %arg5[%c1_84, %c2_85, %c0_86, %c0_87] : memref<3x3x8x8xf32, #tpu.memory_space<vmem>>, vector<1x1x8x8xf32>
    %90 = vector.shape_cast %89 : vector<1x1x8x8xf32> to vector<8x8xf32>
    %cst_88 = arith.constant dense<0.000000e+00> : vector<8x16x8xf32>
    %91 = tpu.matmul %84, %90, %cst_88 {dimension_numbers = #tpu.dot_dimension_numbers<[2], [0], [0, 1], [1], [0, 0, 0, 1, 1, 1], [], []>} : vector<8x16x8xf32>, vector<8x8xf32>, vector<8x16x8xf32> -> vector<8x16x8xf32>
    %92 = arith.addf %83, %91 : vector<8x16x8xf32>
    %93 = vector.extract_strided_slice %74 {offsets = [2, 0, 0], sizes = [8, 16, 8], strides = [1, 1, 1]} : vector<10x16x8xf32> to vector<8x16x8xf32>
    %c2_89 = arith.constant 2 : index
    %c2_90 = arith.constant 2 : index
    %c0_91 = arith.constant 0 : index
    %c0_92 = arith.constant 0 : index
    %94 = vector.load %arg3[%c2_89, %c2_90, %c0_91, %c0_92] : memref<3x3x8x4xf32, #tpu.memory_space<vmem>>, vector<1x1x8x4xf32>
    %95 = vector.shape_cast %94 : vector<1x1x8x4xf32> to vector<8x4xf32>
    %cst_93 = arith.constant dense<0.000000e+00> : vector<8x16x4xf32>
    %96 = tpu.matmul %93, %95, %cst_93 {dimension_numbers = #tpu.dot_dimension_numbers<[2], [0], [0, 1], [1], [0, 0, 0, 1, 1, 1], [], []>} : vector<8x16x8xf32>, vector<8x4xf32>, vector<8x16x4xf32> -> vector<8x16x4xf32>
    %97 = arith.addf %88, %96 : vector<8x16x4xf32>
    %c2_94 = arith.constant 2 : index
    %c2_95 = arith.constant 2 : index
    %c0_96 = arith.constant 0 : index
    %c0_97 = arith.constant 0 : index
    %98 = vector.load %arg5[%c2_94, %c2_95, %c0_96, %c0_97] : memref<3x3x8x8xf32, #tpu.memory_space<vmem>>, vector<1x1x8x8xf32>
    %99 = vector.shape_cast %98 : vector<1x1x8x8xf32> to vector<8x8xf32>
    %cst_98 = arith.constant dense<0.000000e+00> : vector<8x16x8xf32>
    %100 = tpu.matmul %93, %99, %cst_98 {dimension_numbers = #tpu.dot_dimension_numbers<[2], [0], [0, 1], [1], [0, 0, 0, 1, 1, 1], [], []>} : vector<8x16x8xf32>, vector<8x8xf32>, vector<8x16x8xf32> -> vector<8x16x8xf32>
    %101 = arith.addf %92, %100 : vector<8x16x8xf32>
    %102 = vector.shape_cast %97 : vector<8x16x4xf32> to vector<1x8x16x4xf32>
    %c0_99 = arith.constant 0 : index
    %c0_100 = arith.constant 0 : index
    %c0_101 = arith.constant 0 : index
    %c0_102 = arith.constant 0 : index
    %103 = vector.load %arg7[%c0_99, %c0_100, %c0_101, %c0_102] : memref<1x8x16x4xf32, #tpu.memory_space<vmem>>, vector<1x8x16x4xf32>
    tpu.vector_store %arg7[%c0_99, %c0_100, %c0_101, %c0_102], %102 {strides = array<i32>} : memref<1x8x16x4xf32, #tpu.memory_space<vmem>>, vector<1x8x16x4xf32>,
    %104 = vector.shape_cast %101 : vector<8x16x8xf32> to vector<1x8x16x8xf32>
    %c0_103 = arith.constant 0 : index
    %c0_104 = arith.constant 0 : index
    %c0_105 = arith.constant 0 : index
    %c0_106 = arith.constant 0 : index
    %105 = vector.load %arg8[%c0_103, %c0_104, %c0_105, %c0_106] : memref<1x8x16x8xf32, #tpu.memory_space<vmem>>, vector<1x8x16x8xf32>
    tpu.vector_store %arg8[%c0_103, %c0_104, %c0_105, %c0_106], %104 {strides = array<i32>} : memref<1x8x16x8xf32, #tpu.memory_space<vmem>>, vector<1x8x16x8xf32>,
    return
  }
  func.func @transform_0(%arg0: i32, %arg1: i32) -> (i32, i32, i32, i32) {
    %c0_i32 = arith.constant 0 : i32
    %c0_i32_0 = arith.constant 0 : i32
    %c0_i32_1 = arith.constant 0 : i32
    %c0_i32_2 = arith.constant 0 : i32
    return %arg0, %c0_i32, %c0_i32_0, %c0_i32_1 : i32, i32, i32, i32
  }
  func.func @transform_1(%arg0: i32, %arg1: i32) -> (i32, i32, i32, i32) {
    %c0_i32 = arith.constant 0 : i32
    %c0_i32_0 = arith.constant 0 : i32
    %c0_i32_1 = arith.constant 0 : i32
    %c0_i32_2 = arith.constant 0 : i32
    %c0_i32_3 = arith.constant 0 : i32
    return %c0_i32, %c0_i32_0, %c0_i32_1, %c0_i32_2 : i32, i32, i32, i32
  }
  func.func @transform_2(%arg0: i32, %arg1: i32) -> (i32, i32) {
    %c0_i32 = arith.constant 0 : i32
    %c0_i32_0 = arith.constant 0 : i32
    %c0_i32_1 = arith.constant 0 : i32
    return %c0_i32, %c0_i32_0 : i32, i32
  }
  func.func @transform_3(%arg0: i32, %arg1: i32) -> (i32, i32, i32, i32) {
    %c0_i32 = arith.constant 0 : i32
    %c0_i32_0 = arith.constant 0 : i32
    %c0_i32_1 = arith.constant 0 : i32
    %c0_i32_2 = arith.constant 0 : i32
    %c0_i32_3 = arith.constant 0 : i32
    return %c0_i32, %c0_i32_0, %c0_i32_1, %c0_i32_2 : i32, i32, i32, i32
  }
  func.func @transform_4(%arg0: i32, %arg1: i32) -> (i32, i32) {
    %c0_i32 = arith.constant 0 : i32
    %c0_i32_0 = arith.constant 0 : i32
    %c0_i32_1 = arith.constant 0 : i32
    return %c0_i32, %c0_i32_0 : i32, i32
  }
  func.func @transform_5(%arg0: i32, %arg1: i32) -> (i32, i32, i32, i32) {
    %c0_i32 = arith.constant 0 : i32
    %c0_i32_0 = arith.constant 0 : i32
    %c0_i32_1 = arith.constant 0 : i32
    return %arg0, %arg1, %c0_i32, %c0_i32_0 : i32, i32, i32, i32
  }
  func.func @transform_6(%arg0: i32, %arg1: i32) -> (i32, i32, i32, i32) {
    %c0_i32 = arith.constant 0 : i32
    %c0_i32_0 = arith.constant 0 : i32
    %c0_i32_1 = arith.constant 0 : i32
    return %arg0, %arg1, %c0_i32, %c0_i32_0 : i32, i32, i32, i32
  }
}

</mosaic_0001>

<llo_original>
// kernel: keyvalue_forward.1
$region0: #{keyvalue_forward.1}
  #allocation0 [shape = 'u32[]', space=smem, size = 0x4, offset = 0x4, fixed_abs, tag = 'smem constant byte address 0x4 - core index']
  #allocation1 [shape = 'u32[72,128]{1,0:T(1,128)}', space=vmem, size = 0x9000, scoped, tag = 'internal scratch']
  %s0 = inlined_call_operand.vmem [shape: f32[2,18,18,8], index: 0, kind: input, shape index: {}]
  %s1 = inlined_call_operand.vmem [shape: f32[3,3,8,4], index: 1, kind: input, shape index: {}]
  %s2 = inlined_call_operand.vmem [shape: f32[1,4], index: 2, kind: input, shape index: {}]
  %s3 = inlined_call_operand.vmem [shape: f32[3,3,8,8], index: 3, kind: input, shape index: {}]
  %s4 = inlined_call_operand.vmem [shape: f32[1,8], index: 4, kind: input, shape index: {}]
  %s5 = inlined_call_operand.vmem [shape: f32[2,16,16,4], index: 5, kind: output, shape index: {0}]
  %s6 = inlined_call_operand.vmem [shape: f32[2,16,16,8], index: 6, kind: output, shape index: {1}]
  %7 = xla_tuple %s5, %s6
  %s8 = sld [smem:[#allocation0]]
  $region61: #{keyvalue_forward.1} parent=0
    _
  %s10 = ssub.s32 1, %s8
  %s11 = scalar_select 0, %s10, %s8
  loop: start=0, step=1, limit=6
  $region2: #{keyvalue_forward.1} parent=0 // loop_pre_header
    _
  $region3: #{keyvalue_forward.1} parent=0 // loop_header
    %s13 = sphi 0, %s17
    %p14 = scmp.ge.s32.totalorder %s13, 6
    %s20 = sphi 0, %s32
    %s21 = sphi 0, %s28
    %s22 = sphi 0, %s20
    %s23 = sphi 0, %s21
    %s24 = sphi 0, %s22
    %s25 = sphi 0, %s23
    %s35 = sphi 0, %s37
    %s38 = sphi 0, %s35
    %s39 = sphi 0, %s38
    %s55 = sphi 0, %s39
    %s59 = sphi 0, %s59
    %s61 = sphi 0, %s59
    %s62 = sphi 0, %s61
    %s76 = sphi 0, %s62
    %s80 = sphi 0, %s80
    %s82 = sphi 0, %s80
    %s83 = sphi 0, %s82
    %s97 = sphi 0, %s83
    %s101 = sphi 0, %s101
    %s103 = sphi 0, %s101
    %s104 = sphi 0, %s103
    %s118 = sphi 0, %s104
    %s122 = sphi 0, %s122
    %s124 = sphi 0, %s122
    %s125 = sphi 0, %s124
    %s139 = sphi 0, %s125
    %s147 = sphi 0, %s149
    %s150 = sphi 0, %s147
    %s151 = sphi 0, %s150
    %s167 = sphi 0, %s151
    %s175 = sphi 0, %s177
    %s178 = sphi 0, %s175
    %s179 = sphi 0, %s178
    %s195 = sphi 0, %s179
  $region4: #{keyvalue_forward.1} parent=0 // loop_header_branch
    %16 = sbr.rel (%p14) target = $region8
  $region5: #{keyvalue_forward.1} parent=0 // loop_body
    %s18 = ssub.s32 %s13, 1
    %s19 = ssub.s32 %s13, 2
    %s26 = sadd.s32 1, %s21
    %p27 = scmp.ge.s32.totalorder %s26, 2
    %s28 = scalar_select %p27, 0, %s26
    %s29 = sadd.s32 1, %s20
    %s30 = scalar_select %p27, %s29, %s20
    %p31 = scmp.ge.s32.totalorder %s30, 2
    %s32 = scalar_select %p31, 0, %s30
    %s33 = ssub.s32 %s20, %s32
    %p34 = scmp.eq.s32.totalorder %s33, 0
    %s36 = sadd.s32 %s35, 1
    %s37 = scalar_select %p34, %s35, %s36
    %p40 = pneg %p34
    %p41 = scmp.eq.s32.totalorder %s13, 3
    %p42 = por %p40, %p41
    %p43 = scmp.ne.s32.totalorder %s35, %s38
    %p44 = scmp.eq.s32.totalorder %s13, 0
    %p45 = por %p43, %p44
    %p46 = scmp.ne.s32.totalorder %s35, %s38
    %p47 = scmp.eq.s32.totalorder %s18, 3
    %p48 = por %p46, %p47
    %p49 = scmp.ne.s32.totalorder %s38, %s39
    %p50 = scmp.eq.s32.totalorder %s18, 0
    %p51 = por %p49, %p50
    %p52 = scmp.ne.s32.totalorder %s38, %s39
    %p53 = scmp.eq.s32.totalorder %s19, 3
    %p54 = por %p52, %p53
    %p56 = scmp.ne.s32.totalorder %s39, %s55
    %p57 = scmp.eq.s32.totalorder %s19, 0
    %p58 = por %p56, %p57
    %s60 = sadd.s32 %s59, 1
    %p63 = scmp.eq.s32.totalorder %s13, 3
    %p64 = scmp.ne.s32.totalorder %s59, %s61
    %p65 = scmp.eq.s32.totalorder %s13, 0
    %p66 = por %p64, %p65
    %p67 = scmp.ne.s32.totalorder %s59, %s61
    %p68 = scmp.eq.s32.totalorder %s18, 3
    %p69 = por %p67, %p68
    %p70 = scmp.ne.s32.totalorder %s61, %s62
    %p71 = scmp.eq.s32.totalorder %s18, 0
    %p72 = por %p70, %p71
    %p73 = scmp.ne.s32.totalorder %s61, %s62
    %p74 = scmp.eq.s32.totalorder %s19, 3
    %p75 = por %p73, %p74
    %p77 = scmp.ne.s32.totalorder %s62, %s76
    %p78 = scmp.eq.s32.totalorder %s19, 0
    %p79 = por %p77, %p78
    %s81 = sadd.s32 %s80, 1
    %p84 = scmp.eq.s32.totalorder %s13, 3
    %p85 = scmp.ne.s32.totalorder %s80, %s82
    %p86 = scmp.eq.s32.totalorder %s13, 0
    %p87 = por %p85, %p86
    %p88 = scmp.ne.s32.totalorder %s80, %s82
    %p89 = scmp.eq.s32.totalorder %s18, 3
    %p90 = por %p88, %p89
    %p91 = scmp.ne.s32.totalorder %s82, %s83
    %p92 = scmp.eq.s32.totalorder %s18, 0
    %p93 = por %p91, %p92
    %p94 = scmp.ne.s32.totalorder %s82, %s83
    %p95 = scmp.eq.s32.totalorder %s19, 3
    %p96 = por %p94, %p95
    %p98 = scmp.ne.s32.totalorder %s83, %s97
    %p99 = scmp.eq.s32.totalorder %s19, 0
    %p100 = por %p98, %p99
    %s102 = sadd.s32 %s101, 1
    %p105 = scmp.eq.s32.totalorder %s13, 3
    %p106 = scmp.ne.s32.totalorder %s101, %s103
    %p107 = scmp.eq.s32.totalorder %s13, 0
    %p108 = por %p106, %p107
    %p109 = scmp.ne.s32.totalorder %s101, %s103
    %p110 = scmp.eq.s32.totalorder %s18, 3
    %p111 = por %p109, %p110
    %p112 = scmp.ne.s32.totalorder %s103, %s104
    %p113 = scmp.eq.s32.totalorder %s18, 0
    %p114 = por %p112, %p113
    %p115 = scmp.ne.s32.totalorder %s103, %s104
    %p116 = scmp.eq.s32.totalorder %s19, 3
    %p117 = por %p115, %p116
    %p119 = scmp.ne.s32.totalorder %s104, %s118
    %p120 = scmp.eq.s32.totalorder %s19, 0
    %p121 = por %p119, %p120
    %s123 = sadd.s32 %s122, 1
    %p126 = scmp.eq.s32.totalorder %s13, 3
    %p127 = scmp.ne.s32.totalorder %s122, %s124
    %p128 = scmp.eq.s32.totalorder %s13, 0
    %p129 = por %p127, %p128
    %p130 = scmp.ne.s32.totalorder %s122, %s124
    %p131 = scmp.eq.s32.totalorder %s18, 3
    %p132 = por %p130, %p131
    %p133 = scmp.ne.s32.totalorder %s124, %s125
    %p134 = scmp.eq.s32.totalorder %s18, 0
    %p135 = por %p133, %p134
    %p136 = scmp.ne.s32.totalorder %s124, %s125
    %p137 = scmp.eq.s32.totalorder %s19, 3
    %p138 = por %p136, %p137
    %p140 = scmp.ne.s32.totalorder %s125, %s139
    %p141 = scmp.eq.s32.totalorder %s19, 0
    %p142 = por %p140, %p141
    %s143 = ssub.s32 %s20, %s32
    %s144 = ssub.s32 %s21, %s28
    %s145 = sor.u32 %s143, %s144
    %p146 = scmp.eq.s32.totalorder %s145, 0
    %s148 = sadd.s32 %s147, 1
    %s149 = scalar_select %p146, %s147, %s148
    %p152 = pneg %p146
    %p153 = scmp.eq.s32.totalorder %s13, 3
    %p154 = por %p152, %p153
    %p155 = scmp.ne.s32.totalorder %s147, %s150
    %p156 = scmp.eq.s32.totalorder %s13, 0
    %p157 = por %p155, %p156
    %p158 = scmp.ne.s32.totalorder %s147, %s150
    %p159 = scmp.eq.s32.totalorder %s18, 3
    %p160 = por %p158, %p159
    %p161 = scmp.ne.s32.totalorder %s150, %s151
    %p162 = scmp.eq.s32.totalorder %s18, 0
    %p163 = por %p161, %p162
    %p164 = scmp.ne.s32.totalorder %s150, %s151
    %p165 = scmp.eq.s32.totalorder %s19, 3
    %p166 = por %p164, %p165
    %p168 = scmp.ne.s32.totalorder %s151, %s167
    %p169 = scmp.eq.s32.totalorder %s19, 0
    %p170 = por %p168, %p169
    %s171 = ssub.s32 %s20, %s32
    %s172 = ssub.s32 %s21, %s28
    %s173 = sor.u32 %s171, %s172
    %p174 = scmp.eq.s32.totalorder %s173, 0
    %s176 = sadd.s32 %s175, 1
    %s177 = scalar_select %p174, %s175, %s176
    %p180 = pneg %p174
    %p181 = scmp.eq.s32.totalorder %s13, 3
    %p182 = por %p180, %p181
    %p183 = scmp.ne.s32.totalorder %s175, %s178
    %p184 = scmp.eq.s32.totalorder %s13, 0
    %p185 = por %p183, %p184
    %p186 = scmp.ne.s32.totalorder %s175, %s178
    %p187 = scmp.eq.s32.totalorder %s18, 3
    %p188 = por %p186, %p187
    %p189 = scmp.ne.s32.totalorder %s178, %s179
    %p190 = scmp.eq.s32.totalorder %s18, 0
    %p191 = por %p189, %p190
    %p192 = scmp.ne.s32.totalorder %s178, %s179
    %p193 = scmp.eq.s32.totalorder %s19, 3
    %p194 = por %p192, %p193
    %p196 = scmp.ne.s32.totalorder %s179, %s195
    %p197 = scmp.eq.s32.totalorder %s19, 0
    %p198 = por %p196, %p197
    %p199 = scmp.le.s32.totalorder 1, %s13
    %p200 = scmp.lt.s32.totalorder %s13, 5
    %p201 = pnand %p199, %p200
    %p202 = pneg %p201
    // Predicated region
    $region9: #{keyvalue_forward.1} parent=5 // pred_check
      _
    $region10: #{keyvalue_forward.1} parent=5 // pred_check_branch
      %204 = sbr.rel (%p201) target = $region12
    $region11: #{keyvalue_forward.1} parent=5 // pred_region
      %s205 = ssub.s32 %s13, 1
      // Predicated region
      $region13: #{keyvalue_forward.1} parent=11 // pred_check
        %p206 = pneg %p72
      $region14: #{keyvalue_forward.1} parent=11 // pred_check_branch
        %208 = sbr.rel (%p206) target = $region16
      $region15: #{keyvalue_forward.1} parent=11 // pred_region
        _
      $region16: #{keyvalue_forward.1} parent=11 // pred_fallthru
        _
      // Predicated region
      $region17: #{keyvalue_forward.1} parent=11 // pred_check
        %p209 = pneg %p93
      $region18: #{keyvalue_forward.1} parent=11 // pred_check_branch
        %211 = sbr.rel (%p209) target = $region20
      $region19: #{keyvalue_forward.1} parent=11 // pred_region
        _
      $region20: #{keyvalue_forward.1} parent=11 // pred_fallthru
        _
      // Predicated region
      $region21: #{keyvalue_forward.1} parent=11 // pred_check
        %p212 = pneg %p114
      $region22: #{keyvalue_forward.1} parent=11 // pred_check_branch
        %214 = sbr.rel (%p212) target = $region24
      $region23: #{keyvalue_forward.1} parent=11 // pred_region
        _
      $region24: #{keyvalue_forward.1} parent=11 // pred_fallthru
        _
      // Predicated region
      $region25: #{keyvalue_forward.1} parent=11 // pred_check
        %p215 = pneg %p135
      $region26: #{keyvalue_forward.1} parent=11 // pred_check_branch
        %217 = sbr.rel (%p215) target = $region28
      $region27: #{keyvalue_forward.1} parent=11 // pred_region
        _
      $region28: #{keyvalue_forward.1} parent=11 // pred_fallthru
        _
    $region12: #{keyvalue_forward.1} parent=5 // pred_fallthru
      _
    %p218 = scmp.lt.s32.totalorder %s13, 4
    // Predicated region
    $region29: #{keyvalue_forward.1} parent=5 // pred_check
      %p219 = pneg %p218
    $region30: #{keyvalue_forward.1} parent=5 // pred_check_branch
      %221 = sbr.rel (%p219) target = $region32
    $region31: #{keyvalue_forward.1} parent=5 // pred_region
      // Predicated region
      $region33: #{keyvalue_forward.1} parent=31 // pred_check
        %p222 = pneg %p45
      $region34: #{keyvalue_forward.1} parent=31 // pred_check_branch
        %224 = sbr.rel (%p222) target = $region36
      $region35: #{keyvalue_forward.1} parent=31 // pred_region
        %p225 = scmp.lt.s32.totalorder %s20, 1
        %s226 = scalar_select %p225, %s20, 1
        %s227 = smul.addr %s226, 54
        %s228 = smul.addr %s227, 8
        %s229 = scalar_lea.vmem %s0, %s228
      $region36: #{keyvalue_forward.1} parent=31 // pred_fallthru
        _
    $region32: #{keyvalue_forward.1} parent=5 // pred_fallthru
      _
    %p230 = scmp.le.s32.totalorder 1, %s13
    %p231 = scmp.lt.s32.totalorder %s13, 5
    %p232 = pnand %p230, %p231
    %p233 = pneg %p232
    // Predicated region
    $region37: #{keyvalue_forward.1} parent=5 // pred_check
      _
    $region38: #{keyvalue_forward.1} parent=5 // pred_check_branch
      %235 = sbr.rel (%p232) target = $region40
    $region39: #{keyvalue_forward.1} parent=5 // pred_region
      %s236 = ssub.s32 %s13, 1
      %p237 = scmp.lt.s32.totalorder %s22, 1
      %s238 = scalar_select %p237, %s22, 1
      %s239 = smul.addr %s238, 54
      %s240 = smul.addr %s239, 8
      %s241 = scalar_lea.vmem %s0, %s240
      %p242 = pneg %p51
      %p243 = pneg %p48
      %p244 = pneg %p72
      %p245 = pneg %p69
      %p246 = pneg %p93
      %p247 = pneg %p90
      %p248 = pneg %p114
      %p249 = pneg %p111
      %p250 = pneg %p135
      %p251 = pneg %p132
      %p252 = pneg %p163
      %p253 = pneg %p160
      %s254 = smul.u32 8, %s23
      %p255 = scmp.lt.s32.totalorder %s22, 1
      %s256 = scalar_select %p255, %s22, 1
      %p257 = scmp.lt.s32.totalorder %s254, 15
      %s258 = scalar_select %p257, %s254, 15
      %s259 = smul.addr %s258, 2
      %s260 = smul.addr %s256, 32
      %s261 = sadd.s32 %s259, %s260
      %s262 = smul.addr %s261, 8
      %s263 = scalar_lea.vmem %s5, %s262
      %p264 = pneg %p191
      %p265 = pneg %p188
      %s266 = smul.u32 8, %s23
      %p267 = scmp.lt.s32.totalorder %s22, 1
      %s268 = scalar_select %p267, %s22, 1
      %p269 = scmp.lt.s32.totalorder %s266, 15
      %s270 = scalar_select %p269, %s266, 15
      %s271 = smul.addr %s270, 2
      %s272 = smul.addr %s268, 32
      %s273 = sadd.s32 %s271, %s272
      %s274 = smul.addr %s273, 8
      %s275 = scalar_lea.vmem %s6, %s274
      %p276 = scmp.lt.s32.totalorder %s22, 1
      %s277 = scalar_select %p276, %s22, 1
      %s278 = smul.addr %s277, 54
      %s279 = smul.addr %s278, 8
      %s280 = scalar_lea.vmem %s0, %s279
      %s281 = smul.u32 8, %s23
      %p282 = scmp.lt.s32.totalorder %s22, 1
      %s283 = scalar_select %p282, %s22, 1
      %p284 = scmp.lt.s32.totalorder %s281, 15
      %s285 = scalar_select %p284, %s281, 15
      %s286 = smul.addr %s285, 2
      %s287 = smul.addr %s283, 32
      %s288 = sadd.s32 %s286, %s287
      %s289 = smul.addr %s288, 8
      %s290 = scalar_lea.vmem %s5, %s289
      %s291 = smul.u32 8, %s23
      %s292 = smul.u32 8, %s23
      %p293 = scmp.lt.s32.totalorder %s22, 1
      %s294 = scalar_select %p293, %s22, 1
      %p295 = scmp.lt.s32.totalorder %s292, 15
      %s296 = scalar_select %p295, %s292, 15
      %s297 = smul.addr %s296, 2
      %s298 = smul.addr %s294, 32
      %s299 = sadd.s32 %s297, %s298
      %s300 = smul.addr %s299, 8
      %s301 = scalar_lea.vmem %s6, %s300
      %s302 = smul.u32 8, %s23
      %s303 = smul.u32 %s23, 8
      %v304 = vld [vmem:[%s2] sm:$0x1]
      %v306 = vperm.slane %v304, 0
      %v308 = vld [vmem:[%s4] sm:$0x1]
      %v310 = vperm.slane %v308, 0
      %s312 = smul.u32 %s303, 24
      %s313 = scalar_lea.vmem %s280, %s312
      %v314 = vld [vmem:[%s313] sm:$0xff]
      %v315 = vld [vmem:[%s313 + $0x8] sm:$0xff]
      %v316 = vld [vmem:[%s313 + $0x18] sm:$0xff]
      %v317 = vld [vmem:[%s313 + $0x20] sm:$0xff]
      %v318 = vld [vmem:[%s313 + $0x30] sm:$0xff]
      %v319 = vld [vmem:[%s313 + $0x38] sm:$0xff]
      %v320 = vld [vmem:[%s313 + $0x48] sm:$0xff]
      %v321 = vld [vmem:[%s313 + $0x50] sm:$0xff]
      %v322 = vld [vmem:[%s313 + $0x60] sm:$0xff]
      %v323 = vld [vmem:[%s313 + $0x68] sm:$0xff]
      %v324 = vld [vmem:[%s313 + $0x78] sm:$0xff]
      %v325 = vld [vmem:[%s313 + $0x80] sm:$0xff]
      %v326 = vld [vmem:[%s313 + $0x90] sm:$0xff]
      %v327 = vld [vmem:[%s313 + $0x98] sm:$0xff]
      %v328 = vld [vmem:[%s313 + $0xa8] sm:$0xff]
      %v329 = vld [vmem:[%s313 + $0xb0] sm:$0xff]
      %v330 = vld [vmem:[%s313 + $0xc0] sm:$0xff]
      %v331 = vld [vmem:[%s313 + $0xc8] sm:$0xff]
      %v332 = vld [vmem:[%s313 + $0xd8] sm:$0xff]
      %v333 = vld [vmem:[%s313 + $0xe0] sm:$0xff]
      %v334 = vld [vmem:[%s1] sm:$0xff]
      %vm335 = vcmask 64512
      %v337 = vsel %vm335, %v314, 0
      %v340 = vsel %vm335, %v315, 0
      %v343 = vsel %vm335, %v316, 0
      %v346 = vsel %vm335, %v317, 0
      %v349 = vsel %vm335, %v318, 0
      %v352 = vsel %vm335, %v319, 0
      %v355 = vsel %vm335, %v320, 0
      %v358 = vsel %vm335, %v321, 0
      %v361 = vsel %vm335, %v322, 0
      %v364 = vsel %vm335, %v323, 0
      %v367 = vsel %vm335, %v324, 0
      %v370 = vsel %vm335, %v325, 0
      %v373 = vsel %vm335, %v326, 0
      %v376 = vsel %vm335, %v327, 0
      %v379 = vsel %vm335, %v328, 0
      %v382 = vsel %vm335, %v329, 0
      %384 = vmatpush.msra.mxu0 0.0
      %385 = vmatpush.msra.mxu0 0.0
      %386 = vmatpush.msra.mxu0 0.0
      %387 = vmatpush.msra.mxu0 0.0
      %388 = vmatpush.msra.mxu0 0.0
      %389 = vmatpush.msra.mxu0 0.0
      %390 = vmatpush.msra.mxu0 0.0
      %391 = vmatpush.msra.mxu0 0.0
      %392 = vmatpush.msra.mxu0 0.0
      %393 = vmatpush.msra.mxu0 0.0
      %394 = vmatpush.msra.mxu0 0.0
      %395 = vmatpush.msra.mxu0 0.0
      %396 = vmatpush.msra.mxu0 0.0
      %397 = vmatpush.msra.mxu0 0.0
      %398 = vmatpush.msra.mxu0 0.0
      %399 = vmatpush.msra.mxu0 %v334
      %400 = vmatmul.f32.gmra.mxu0 %v337
      %v401 = vpop.f32.mrf.mxu0
      %v402 = vadd.f32 0.0, %v401
      %403 = vmatmul.f32.gmra.mxu0 %v340
      %v404 = vpop.f32.mrf.mxu0
      %v405 = vadd.f32 0.0, %v404
      %406 = vmatmul.f32.gmra.mxu0 %v343
      %v407 = vpop.f32.mrf.mxu0
      %v408 = vadd.f32 0.0, %v407
      %409 = vmatmul.f32.gmra.mxu0 %v346
      %v410 = vpop.f32.mrf.mxu0
      %v411 = vadd.f32 0.0, %v410
      %412 = vmatmul.f32.gmra.mxu0 %v349
      %v413 = vpop.f32.mrf.mxu0
      %v414 = vadd.f32 0.0, %v413
      %415 = vmatmul.f32.gmra.mxu0 %v352
      %v416 = vpop.f32.mrf.mxu0
      %v417 = vadd.f32 0.0, %v416
      %418 = vmatmul.f32.gmra.mxu0 %v355
      %v419 = vpop.f32.mrf.mxu0
      %v420 = vadd.f32 0.0, %v419
      %421 = vmatmul.f32.gmra.mxu0 %v358
      %v422 = vpop.f32.mrf.mxu0
      %v423 = vadd.f32 0.0, %v422
      %424 = vmatmul.f32.gmra.mxu0 %v361
      %v425 = vpop.f32.mrf.mxu0
      %v426 = vadd.f32 0.0, %v425
      %427 = vmatmul.f32.gmra.mxu0 %v364
      %v428 = vpop.f32.mrf.mxu0
      %v429 = vadd.f32 0.0, %v428
      %430 = vmatmul.f32.gmra.mxu0 %v367
      %v431 = vpop.f32.mrf.mxu0
      %v432 = vadd.f32 0.0, %v431
      %433 = vmatmul.f32.gmra.mxu0 %v370
      %v434 = vpop.f32.mrf.mxu0
      %v435 = vadd.f32 0.0, %v434
      %436 = vmatmul.f32.gmra.mxu0 %v373
      %v437 = vpop.f32.mrf.mxu0
      %v438 = vadd.f32 0.0, %v437
      %439 = vmatmul.f32.gmra.mxu0 %v376
      %v440 = vpop.f32.mrf.mxu0
      %v441 = vadd.f32 0.0, %v440
      %442 = vmatmul.f32.gmra.mxu0 %v379
      %v443 = vpop.f32.mrf.mxu0
      %v444 = vadd.f32 0.0, %v443
      %445 = vmatmul.f32.gmra.mxu0 %v382
      %v446 = vpop.f32.mrf.mxu0
      %v447 = vadd.f32 0.0, %v446
      %448 = vdwg.mxu0
      %v449 = vadd.f32 %v306, %v402
      %v450 = vadd.f32 %v306, %v405
      %v451 = vadd.f32 %v306, %v408
      %v452 = vadd.f32 %v306, %v411
      %v453 = vadd.f32 %v306, %v414
      %v454 = vadd.f32 %v306, %v417
      %v455 = vadd.f32 %v306, %v420
      %v456 = vadd.f32 %v306, %v423
      %v457 = vadd.f32 %v306, %v426
      %v458 = vadd.f32 %v306, %v429
      %v459 = vadd.f32 %v306, %v432
      %v460 = vadd.f32 %v306, %v435
      %v461 = vadd.f32 %v306, %v438
      %v462 = vadd.f32 %v306, %v441
      %v463 = vadd.f32 %v306, %v444
      %v464 = vadd.f32 %v306, %v447
      %v465 = vld [vmem:[%s3] sm:$0xff]
      %466 = vmatpush.msra.mxu0 0.0
      %467 = vmatpush.msra.mxu0 0.0
      %468 = vmatpush.msra.mxu0 0.0
      %469 = vmatpush.msra.mxu0 0.0
      %470 = vmatpush.msra.mxu0 0.0
      %471 = vmatpush.msra.mxu0 0.0
      %472 = vmatpush.msra.mxu0 0.0
      %473 = vmatpush.msra.mxu0 0.0
      %474 = vmatpush.msra.mxu0 0.0
      %475 = vmatpush.msra.mxu0 0.0
      %476 = vmatpush.msra.mxu0 0.0
      %477 = vmatpush.msra.mxu0 0.0
      %478 = vmatpush.msra.mxu0 0.0
      %479 = vmatpush.msra.mxu0 0.0
      %480 = vmatpush.msra.mxu0 0.0
      %481 = vmatpush.msra.mxu0 %v465
      %482 = vmatmul.f32.gmra.mxu0 %v337
      %v483 = vpop.f32.mrf.mxu0
      %v484 = vadd.f32 0.0, %v483
      %485 = vmatmul.f32.gmra.mxu0 %v340
      %v486 = vpop.f32.mrf.mxu0
      %v487 = vadd.f32 0.0, %v486
      %488 = vmatmul.f32.gmra.mxu0 %v343
      %v489 = vpop.f32.mrf.mxu0
      %v490 = vadd.f32 0.0, %v489
      %491 = vmatmul.f32.gmra.mxu0 %v346
      %v492 = vpop.f32.mrf.mxu0
      %v493 = vadd.f32 0.0, %v492
      %494 = vmatmul.f32.gmra.mxu0 %v349
      %v495 = vpop.f32.mrf.mxu0
      %v496 = vadd.f32 0.0, %v495
      %497 = vmatmul.f32.gmra.mxu0 %v352
      %v498 = vpop.f32.mrf.mxu0
      %v499 = vadd.f32 0.0, %v498
      %500 = vmatmul.f32.gmra.mxu0 %v355
      %v501 = vpop.f32.mrf.mxu0
      %v502 = vadd.f32 0.0, %v501
      %503 = vmatmul.f32.gmra.mxu0 %v358
      %v504 = vpop.f32.mrf.mxu0
      %v505 = vadd.f32 0.0, %v504
      %506 = vmatmul.f32.gmra.mxu0 %v361
      %v507 = vpop.f32.mrf.mxu0
      %v508 = vadd.f32 0.0, %v507
      %509 = vmatmul.f32.gmra.mxu0 %v364
      %v510 = vpop.f32.mrf.mxu0
      %v511 = vadd.f32 0.0, %v510
      %512 = vmatmul.f32.gmra.mxu0 %v367
      %v513 = vpop.f32.mrf.mxu0
      %v514 = vadd.f32 0.0, %v513
      %515 = vmatmul.f32.gmra.mxu0 %v370
      %v516 = vpop.f32.mrf.mxu0
      %v517 = vadd.f32 0.0, %v516
      %518 = vmatmul.f32.gmra.mxu0 %v373
      %v519 = vpop.f32.mrf.mxu0
      %v520 = vadd.f32 0.0, %v519
      %521 = vmatmul.f32.gmra.mxu0 %v376
      %v522 = vpop.f32.mrf.mxu0
      %v523 = vadd.f32 0.0, %v522
      %524 = vmatmul.f32.gmra.mxu0 %v379
      %v525 = vpop.f32.mrf.mxu0
      %v526 = vadd.f32 0.0, %v525
      %527 = vmatmul.f32.gmra.mxu0 %v382
      %v528 = vpop.f32.mrf.mxu0
      %v529 = vadd.f32 0.0, %v528
      %530 = vdwg.mxu0
      %v531 = vadd.f32 %v310, %v484
      %v532 = vadd.f32 %v310, %v487
      %v533 = vadd.f32 %v310, %v490
      %v534 = vadd.f32 %v310, %v493
      %v535 = vadd.f32 %v310, %v496
      %v536 = vadd.f32 %v310, %v499
      %v537 = vadd.f32 %v310, %v502
      %v538 = vadd.f32 %v310, %v505
      %v539 = vadd.f32 %v310, %v508
      %v540 = vadd.f32 %v310, %v511
      %v541 = vadd.f32 %v310, %v514
      %v542 = vadd.f32 %v310, %v517
      %v543 = vadd.f32 %v310, %v520
      %v544 = vadd.f32 %v310, %v523
      %v545 = vadd.f32 %v310, %v526
      %v546 = vadd.f32 %v310, %v529
      %s547 = scalar_lea.vmem %s1, 24
      %v548 = vld [vmem:[%s547] sm:$0xff]
      %v550 = vsel %vm335, %v330, 0
      %v553 = vsel %vm335, %v331, 0
      %555 = vmatpush.msra.mxu0 0.0
      %556 = vmatpush.msra.mxu0 0.0
      %557 = vmatpush.msra.mxu0 0.0
      %558 = vmatpush.msra.mxu0 0.0
      %559 = vmatpush.msra.mxu0 0.0
      %560 = vmatpush.msra.mxu0 0.0
      %561 = vmatpush.msra.mxu0 0.0
      %562 = vmatpush.msra.mxu0 0.0
      %563 = vmatpush.msra.mxu0 0.0
      %564 = vmatpush.msra.mxu0 0.0
      %565 = vmatpush.msra.mxu0 0.0
      %566 = vmatpush.msra.mxu0 0.0
      %567 = vmatpush.msra.mxu0 0.0
      %568 = vmatpush.msra.mxu0 0.0
      %569 = vmatpush.msra.mxu0 0.0
      %570 = vmatpush.msra.mxu0 %v548
      %571 = vmatmul.f32.gmra.mxu0 %v343
      %v572 = vpop.f32.mrf.mxu0
      %v573 = vadd.f32 0.0, %v572
      %574 = vmatmul.f32.gmra.mxu0 %v346
      %v575 = vpop.f32.mrf.mxu0
      %v576 = vadd.f32 0.0, %v575
      %577 = vmatmul.f32.gmra.mxu0 %v349
      %v578 = vpop.f32.mrf.mxu0
      %v579 = vadd.f32 0.0, %v578
      %580 = vmatmul.f32.gmra.mxu0 %v352
      %v581 = vpop.f32.mrf.mxu0
      %v582 = vadd.f32 0.0, %v581
      %583 = vmatmul.f32.gmra.mxu0 %v355
      %v584 = vpop.f32.mrf.mxu0
      %v585 = vadd.f32 0.0, %v584
      %586 = vmatmul.f32.gmra.mxu0 %v358
      %v587 = vpop.f32.mrf.mxu0
      %v588 = vadd.f32 0.0, %v587
      %589 = vmatmul.f32.gmra.mxu0 %v361
      %v590 = vpop.f32.mrf.mxu0
      %v591 = vadd.f32 0.0, %v590
      %592 = vmatmul.f32.gmra.mxu0 %v364
      %v593 = vpop.f32.mrf.mxu0
      %v594 = vadd.f32 0.0, %v593
      %595 = vmatmul.f32.gmra.mxu0 %v367
      %v596 = vpop.f32.mrf.mxu0
      %v597 = vadd.f32 0.0, %v596
      %598 = vmatmul.f32.gmra.mxu0 %v370
      %v599 = vpop.f32.mrf.mxu0
      %v600 = vadd.f32 0.0, %v599
      %601 = vmatmul.f32.gmra.mxu0 %v373
      %v602 = vpop.f32.mrf.mxu0
      %v603 = vadd.f32 0.0, %v602
      %604 = vmatmul.f32.gmra.mxu0 %v376
      %v605 = vpop.f32.mrf.mxu0
      %v606 = vadd.f32 0.0, %v605
      %607 = vmatmul.f32.gmra.mxu0 %v379
      %v608 = vpop.f32.mrf.mxu0
      %v609 = vadd.f32 0.0, %v608
      %610 = vmatmul.f32.gmra.mxu0 %v382
      %v611 = vpop.f32.mrf.mxu0
      %v612 = vadd.f32 0.0, %v611
      %613 = vmatmul.f32.gmra.mxu0 %v550
      %v614 = vpop.f32.mrf.mxu0
      %v615 = vadd.f32 0.0, %v614
      %616 = vmatmul.f32.gmra.mxu0 %v553
      %v617 = vpop.f32.mrf.mxu0
      %v618 = vadd.f32 0.0, %v617
      %619 = vdwg.mxu0
      %v620 = vadd.f32 %v449, %v573
      %v621 = vadd.f32 %v450, %v576
      %v622 = vadd.f32 %v451, %v579
      %v623 = vadd.f32 %v452, %v582
      %v624 = vadd.f32 %v453, %v585
      %v625 = vadd.f32 %v454, %v588
      %v626 = vadd.f32 %v455, %v591
      %v627 = vadd.f32 %v456, %v594
      %v628 = vadd.f32 %v457, %v597
      %v629 = vadd.f32 %v458, %v600
      %v630 = vadd.f32 %v459, %v603
      %v631 = vadd.f32 %v460, %v606
      %v632 = vadd.f32 %v461, %v609
      %v633 = vadd.f32 %v462, %v612
      %v634 = vadd.f32 %v463, %v615
      %v635 = vadd.f32 %v464, %v618
      %s636 = scalar_lea.vmem %s3, 24
      %v637 = vld [vmem:[%s636] sm:$0xff]
      %638 = vmatpush.msra.mxu0 0.0
      %639 = vmatpush.msra.mxu0 0.0
      %640 = vmatpush.msra.mxu0 0.0
      %641 = vmatpush.msra.mxu0 0.0
      %642 = vmatpush.msra.mxu0 0.0
      %643 = vmatpush.msra.mxu0 0.0
      %644 = vmatpush.msra.mxu0 0.0
      %645 = vmatpush.msra.mxu0 0.0
      %646 = vmatpush.msra.mxu0 0.0
      %647 = vmatpush.msra.mxu0 0.0
      %648 = vmatpush.msra.mxu0 0.0
      %649 = vmatpush.msra.mxu0 0.0
      %650 = vmatpush.msra.mxu0 0.0
      %651 = vmatpush.msra.mxu0 0.0
      %652 = vmatpush.msra.mxu0 0.0
      %653 = vmatpush.msra.mxu0 %v637
      %654 = vmatmul.f32.gmra.mxu0 %v343
      %v655 = vpop.f32.mrf.mxu0
      %v656 = vadd.f32 0.0, %v655
      %657 = vmatmul.f32.gmra.mxu0 %v346
      %v658 = vpop.f32.mrf.mxu0
      %v659 = vadd.f32 0.0, %v658
      %660 = vmatmul.f32.gmra.mxu0 %v349
      %v661 = vpop.f32.mrf.mxu0
      %v662 = vadd.f32 0.0, %v661
      %663 = vmatmul.f32.gmra.mxu0 %v352
      %v664 = vpop.f32.mrf.mxu0
      %v665 = vadd.f32 0.0, %v664
      %666 = vmatmul.f32.gmra.mxu0 %v355
      %v667 = vpop.f32.mrf.mxu0
      %v668 = vadd.f32 0.0, %v667
      %669 = vmatmul.f32.gmra.mxu0 %v358
      %v670 = vpop.f32.mrf.mxu0
      %v671 = vadd.f32 0.0, %v670
      %672 = vmatmul.f32.gmra.mxu0 %v361
      %v673 = vpop.f32.mrf.mxu0
      %v674 = vadd.f32 0.0, %v673
      %675 = vmatmul.f32.gmra.mxu0 %v364
      %v676 = vpop.f32.mrf.mxu0
      %v677 = vadd.f32 0.0, %v676
      %678 = vmatmul.f32.gmra.mxu0 %v367
      %v679 = vpop.f32.mrf.mxu0
      %v680 = vadd.f32 0.0, %v679
      %681 = vmatmul.f32.gmra.mxu0 %v370
      %v682 = vpop.f32.mrf.mxu0
      %v683 = vadd.f32 0.0, %v682
      %684 = vmatmul.f32.gmra.mxu0 %v373
      %v685 = vpop.f32.mrf.mxu0
      %v686 = vadd.f32 0.0, %v685
      %687 = vmatmul.f32.gmra.mxu0 %v376
      %v688 = vpop.f32.mrf.mxu0
      %v689 = vadd.f32 0.0, %v688
      %690 = vmatmul.f32.gmra.mxu0 %v379
      %v691 = vpop.f32.mrf.mxu0
      %v692 = vadd.f32 0.0, %v691
      %693 = vmatmul.f32.gmra.mxu0 %v382
      %v694 = vpop.f32.mrf.mxu0
      %v695 = vadd.f32 0.0, %v694
      %696 = vmatmul.f32.gmra.mxu0 %v550
      %v697 = vpop.f32.mrf.mxu0
      %v698 = vadd.f32 0.0, %v697
      %699 = vmatmul.f32.gmra.mxu0 %v553
      %v700 = vpop.f32.mrf.mxu0
      %v701 = vadd.f32 0.0, %v700
      %702 = vdwg.mxu0
      %v703 = vadd.f32 %v531, %v656
      %v704 = vadd.f32 %v532, %v659
      %v705 = vadd.f32 %v533, %v662
      %v706 = vadd.f32 %v534, %v665
      %v707 = vadd.f32 %v535, %v668
      %v708 = vadd.f32 %v536, %v671
      %v709 = vadd.f32 %v537, %v674
      %v710 = vadd.f32 %v538, %v677
      %v711 = vadd.f32 %v539, %v680
      %v712 = vadd.f32 %v540, %v683
      %v713 = vadd.f32 %v541, %v686
      %v714 = vadd.f32 %v542, %v689
      %v715 = vadd.f32 %v543, %v692
      %v716 = vadd.f32 %v544, %v695
      %v717 = vadd.f32 %v545, %v698
      %v718 = vadd.f32 %v546, %v701
      %s719 = scalar_lea.vmem %s1, 48
      %v720 = vld [vmem:[%s719] sm:$0xff]
      %v722 = vsel %vm335, %v332, 0
      %v725 = vsel %vm335, %v333, 0
      %727 = vmatpush.msra.mxu0 0.0
      %728 = vmatpush.msra.mxu0 0.0
      %729 = vmatpush.msra.mxu0 0.0
      %730 = vmatpush.msra.mxu0 0.0
      %731 = vmatpush.msra.mxu0 0.0
      %732 = vmatpush.msra.mxu0 0.0
      %733 = vmatpush.msra.mxu0 0.0
      %734 = vmatpush.msra.mxu0 0.0
      %735 = vmatpush.msra.mxu0 0.0
      %736 = vmatpush.msra.mxu0 0.0
      %737 = vmatpush.msra.mxu0 0.0
      %738 = vmatpush.msra.mxu0 0.0
      %739 = vmatpush.msra.mxu0 0.0
      %740 = vmatpush.msra.mxu0 0.0
      %741 = vmatpush.msra.mxu0 0.0
      %742 = vmatpush.msra.mxu0 %v720
      %743 = vmatmul.f32.gmra.mxu0 %v349
      %v744 = vpop.f32.mrf.mxu0
      %v745 = vadd.f32 0.0, %v744
      %746 = vmatmul.f32.gmra.mxu0 %v352
      %v747 = vpop.f32.mrf.mxu0
      %v748 = vadd.f32 0.0, %v747
      %749 = vmatmul.f32.gmra.mxu0 %v355
      %v750 = vpop.f32.mrf.mxu0
      %v751 = vadd.f32 0.0, %v750
      %752 = vmatmul.f32.gmra.mxu0 %v358
      %v753 = vpop.f32.mrf.mxu0
      %v754 = vadd.f32 0.0, %v753
      %755 = vmatmul.f32.gmra.mxu0 %v361
      %v756 = vpop.f32.mrf.mxu0
      %v757 = vadd.f32 0.0, %v756
      %758 = vmatmul.f32.gmra.mxu0 %v364
      %v759 = vpop.f32.mrf.mxu0
      %v760 = vadd.f32 0.0, %v759
      %761 = vmatmul.f32.gmra.mxu0 %v367
      %v762 = vpop.f32.mrf.mxu0
      %v763 = vadd.f32 0.0, %v762
      %764 = vmatmul.f32.gmra.mxu0 %v370
      %v765 = vpop.f32.mrf.mxu0
      %v766 = vadd.f32 0.0, %v765
      %767 = vmatmul.f32.gmra.mxu0 %v373
      %v768 = vpop.f32.mrf.mxu0
      %v769 = vadd.f32 0.0, %v768
      %770 = vmatmul.f32.gmra.mxu0 %v376
      %v771 = vpop.f32.mrf.mxu0
      %v772 = vadd.f32 0.0, %v771
      %773 = vmatmul.f32.gmra.mxu0 %v379
      %v774 = vpop.f32.mrf.mxu0
      %v775 = vadd.f32 0.0, %v774
      %776 = vmatmul.f32.gmra.mxu0 %v382
      %v777 = vpop.f32.mrf.mxu0
      %v778 = vadd.f32 0.0, %v777
      %779 = vmatmul.f32.gmra.mxu0 %v550
      %v780 = vpop.f32.mrf.mxu0
      %v781 = vadd.f32 0.0, %v780
      %782 = vmatmul.f32.gmra.mxu0 %v553
      %v783 = vpop.f32.mrf.mxu0
      %v784 = vadd.f32 0.0, %v783
      %785 = vmatmul.f32.gmra.mxu0 %v722
      %v786 = vpop.f32.mrf.mxu0
      %v787 = vadd.f32 0.0, %v786
      %788 = vmatmul.f32.gmra.mxu0 %v725
      %v789 = vpop.f32.mrf.mxu0
      %v790 = vadd.f32 0.0, %v789
      %791 = vdwg.mxu0
      %v792 = vadd.f32 %v620, %v745
      %v793 = vadd.f32 %v621, %v748
      %v794 = vadd.f32 %v622, %v751
      %v795 = vadd.f32 %v623, %v754
      %v796 = vadd.f32 %v624, %v757
      %v797 = vadd.f32 %v625, %v760
      %v798 = vadd.f32 %v626, %v763
      %v799 = vadd.f32 %v627, %v766
      %v800 = vadd.f32 %v628, %v769
      %v801 = vadd.f32 %v629, %v772
      %v802 = vadd.f32 %v630, %v775
      %v803 = vadd.f32 %v631, %v778
      %v804 = vadd.f32 %v632, %v781
      %v805 = vadd.f32 %v633, %v784
      %v806 = vadd.f32 %v634, %v787
      %v807 = vadd.f32 %v635, %v790
      %s808 = scalar_lea.vmem %s3, 48
      %v809 = vld [vmem:[%s808] sm:$0xff]
      %810 = vmatpush.msra.mxu0 0.0
      %811 = vmatpush.msra.mxu0 0.0
      %812 = vmatpush.msra.mxu0 0.0
      %813 = vmatpush.msra.mxu0 0.0
      %814 = vmatpush.msra.mxu0 0.0
      %815 = vmatpush.msra.mxu0 0.0
      %816 = vmatpush.msra.mxu0 0.0
      %817 = vmatpush.msra.mxu0 0.0
      %818 = vmatpush.msra.mxu0 0.0
      %819 = vmatpush.msra.mxu0 0.0
      %820 = vmatpush.msra.mxu0 0.0
      %821 = vmatpush.msra.mxu0 0.0
      %822 = vmatpush.msra.mxu0 0.0
      %823 = vmatpush.msra.mxu0 0.0
      %824 = vmatpush.msra.mxu0 0.0
      %825 = vmatpush.msra.mxu0 %v809
      %826 = vmatmul.f32.gmra.mxu0 %v349
      %v827 = vpop.f32.mrf.mxu0
      %v828 = vadd.f32 0.0, %v827
      %829 = vmatmul.f32.gmra.mxu0 %v352
      %v830 = vpop.f32.mrf.mxu0
      %v831 = vadd.f32 0.0, %v830
      %832 = vmatmul.f32.gmra.mxu0 %v355
      %v833 = vpop.f32.mrf.mxu0
      %v834 = vadd.f32 0.0, %v833
      %835 = vmatmul.f32.gmra.mxu0 %v358
      %v836 = vpop.f32.mrf.mxu0
      %v837 = vadd.f32 0.0, %v836
      %838 = vmatmul.f32.gmra.mxu0 %v361
      %v839 = vpop.f32.mrf.mxu0
      %v840 = vadd.f32 0.0, %v839
      %841 = vmatmul.f32.gmra.mxu0 %v364
      %v842 = vpop.f32.mrf.mxu0
      %v843 = vadd.f32 0.0, %v842
      %844 = vmatmul.f32.gmra.mxu0 %v367
      %v845 = vpop.f32.mrf.mxu0
      %v846 = vadd.f32 0.0, %v845
      %847 = vmatmul.f32.gmra.mxu0 %v370
      %v848 = vpop.f32.mrf.mxu0
      %v849 = vadd.f32 0.0, %v848
      %850 = vmatmul.f32.gmra.mxu0 %v373
      %v851 = vpop.f32.mrf.mxu0
      %v852 = vadd.f32 0.0, %v851
      %853 = vmatmul.f32.gmra.mxu0 %v376
      %v854 = vpop.f32.mrf.mxu0
      %v855 = vadd.f32 0.0, %v854
      %856 = vmatmul.f32.gmra.mxu0 %v379
      %v857 = vpop.f32.mrf.mxu0
      %v858 = vadd.f32 0.0, %v857
      %859 = vmatmul.f32.gmra.mxu0 %v382
      %v860 = vpop.f32.mrf.mxu0
      %v861 = vadd.f32 0.0, %v860
      %862 = vmatmul.f32.gmra.mxu0 %v550
      %v863 = vpop.f32.mrf.mxu0
      %v864 = vadd.f32 0.0, %v863
      %865 = vmatmul.f32.gmra.mxu0 %v553
      %v866 = vpop.f32.mrf.mxu0
      %v867 = vadd.f32 0.0, %v866
      %868 = vmatmul.f32.gmra.mxu0 %v722
      %v869 = vpop.f32.mrf.mxu0
      %v870 = vadd.f32 0.0, %v869
      %871 = vmatmul.f32.gmra.mxu0 %v725
      %v872 = vpop.f32.mrf.mxu0
      %v873 = vadd.f32 0.0, %v872
      %874 = vdwg.mxu0
      %v875 = vadd.f32 %v703, %v828
      %v876 = vadd.f32 %v704, %v831
      %v877 = vadd.f32 %v705, %v834
      %v878 = vadd.f32 %v706, %v837
      %v879 = vadd.f32 %v707, %v840
      %v880 = vadd.f32 %v708, %v843
      %v881 = vadd.f32 %v709, %v846
      %v882 = vadd.f32 %v710, %v849
      %v883 = vadd.f32 %v711, %v852
      %v884 = vadd.f32 %v712, %v855
      %v885 = vadd.f32 %v713, %v858
      %v886 = vadd.f32 %v714, %v861
      %v887 = vadd.f32 %v715, %v864
      %v888 = vadd.f32 %v716, %v867
      %v889 = vadd.f32 %v717, %v870
      %v890 = vadd.f32 %v718, %v873
      %v891 = vld [vmem:[%s313 + $0x1] sm:$0xff]
      %v892 = vld [vmem:[%s313 + $0x9] sm:$0xff]
      %v893 = vld [vmem:[%s313 + $0x19] sm:$0xff]
      %v894 = vld [vmem:[%s313 + $0x21] sm:$0xff]
      %v895 = vld [vmem:[%s313 + $0x31] sm:$0xff]
      %v896 = vld [vmem:[%s313 + $0x39] sm:$0xff]
      %v897 = vld [vmem:[%s313 + $0x49] sm:$0xff]
      %v898 = vld [vmem:[%s313 + $0x51] sm:$0xff]
      %v899 = vld [vmem:[%s313 + $0x61] sm:$0xff]
      %v900 = vld [vmem:[%s313 + $0x69] sm:$0xff]
      %v901 = vld [vmem:[%s313 + $0x79] sm:$0xff]
      %v902 = vld [vmem:[%s313 + $0x81] sm:$0xff]
      %v903 = vld [vmem:[%s313 + $0x91] sm:$0xff]
      %v904 = vld [vmem:[%s313 + $0x99] sm:$0xff]
      %v905 = vld [vmem:[%s313 + $0xa9] sm:$0xff]
      %v906 = vld [vmem:[%s313 + $0xb1] sm:$0xff]
      %v907 = vld [vmem:[%s313 + $0xc1] sm:$0xff]
      %v908 = vld [vmem:[%s313 + $0xc9] sm:$0xff]
      %v909 = vld [vmem:[%s313 + $0xd9] sm:$0xff]
      %v910 = vld [vmem:[%s313 + $0xe1] sm:$0xff]
      %s911 = scalar_lea.vmem %s1, 8
      %v912 = vld [vmem:[%s911] sm:$0xff]
      %v914 = vsel %vm335, %v891, 0
      %v917 = vsel %vm335, %v892, 0
      %v920 = vsel %vm335, %v893, 0
      %v923 = vsel %vm335, %v894, 0
      %v926 = vsel %vm335, %v895, 0
      %v929 = vsel %vm335, %v896, 0
      %v932 = vsel %vm335, %v897, 0
      %v935 = vsel %vm335, %v898, 0
      %v938 = vsel %vm335, %v899, 0
      %v941 = vsel %vm335, %v900, 0
      %v944 = vsel %vm335, %v901, 0
      %v947 = vsel %vm335, %v902, 0
      %v950 = vsel %vm335, %v903, 0
      %v953 = vsel %vm335, %v904, 0
      %v956 = vsel %vm335, %v905, 0
      %v959 = vsel %vm335, %v906, 0
      %961 = vmatpush.msra.mxu0 0.0
      %962 = vmatpush.msra.mxu0 0.0
      %963 = vmatpush.msra.mxu0 0.0
      %964 = vmatpush.msra.mxu0 0.0
      %965 = vmatpush.msra.mxu0 0.0
      %966 = vmatpush.msra.mxu0 0.0
      %967 = vmatpush.msra.mxu0 0.0
      %968 = vmatpush.msra.mxu0 0.0
      %969 = vmatpush.msra.mxu0 0.0
      %970 = vmatpush.msra.mxu0 0.0
      %971 = vmatpush.msra.mxu0 0.0
      %972 = vmatpush.msra.mxu0 0.0
      %973 = vmatpush.msra.mxu0 0.0
      %974 = vmatpush.msra.mxu0 0.0
      %975 = vmatpush.msra.mxu0 0.0
      %976 = vmatpush.msra.mxu0 %v912
      %977 = vmatmul.f32.gmra.mxu0 %v914
      %v978 = vpop.f32.mrf.mxu0
      %v979 = vadd.f32 0.0, %v978
      %980 = vmatmul.f32.gmra.mxu0 %v917
      %v981 = vpop.f32.mrf.mxu0
      %v982 = vadd.f32 0.0, %v981
      %983 = vmatmul.f32.gmra.mxu0 %v920
      %v984 = vpop.f32.mrf.mxu0
      %v985 = vadd.f32 0.0, %v984
      %986 = vmatmul.f32.gmra.mxu0 %v923
      %v987 = vpop.f32.mrf.mxu0
      %v988 = vadd.f32 0.0, %v987
      %989 = vmatmul.f32.gmra.mxu0 %v926
      %v990 = vpop.f32.mrf.mxu0
      %v991 = vadd.f32 0.0, %v990
      %992 = vmatmul.f32.gmra.mxu0 %v929
      %v993 = vpop.f32.mrf.mxu0
      %v994 = vadd.f32 0.0, %v993
      %995 = vmatmul.f32.gmra.mxu0 %v932
      %v996 = vpop.f32.mrf.mxu0
      %v997 = vadd.f32 0.0, %v996
      %998 = vmatmul.f32.gmra.mxu0 %v935
      %v999 = vpop.f32.mrf.mxu0
      %v1000 = vadd.f32 0.0, %v999
      %1001 = vmatmul.f32.gmra.mxu0 %v938
      %v1002 = vpop.f32.mrf.mxu0
      %v1003 = vadd.f32 0.0, %v1002
      %1004 = vmatmul.f32.gmra.mxu0 %v941
      %v1005 = vpop.f32.mrf.mxu0
      %v1006 = vadd.f32 0.0, %v1005
      %1007 = vmatmul.f32.gmra.mxu0 %v944
      %v1008 = vpop.f32.mrf.mxu0
      %v1009 = vadd.f32 0.0, %v1008
      %1010 = vmatmul.f32.gmra.mxu0 %v947
      %v1011 = vpop.f32.mrf.mxu0
      %v1012 = vadd.f32 0.0, %v1011
      %1013 = vmatmul.f32.gmra.mxu0 %v950
      %v1014 = vpop.f32.mrf.mxu0
      %v1015 = vadd.f32 0.0, %v1014
      %1016 = vmatmul.f32.gmra.mxu0 %v953
      %v1017 = vpop.f32.mrf.mxu0
      %v1018 = vadd.f32 0.0, %v1017
      %1019 = vmatmul.f32.gmra.mxu0 %v956
      %v1020 = vpop.f32.mrf.mxu0
      %v1021 = vadd.f32 0.0, %v1020
      %1022 = vmatmul.f32.gmra.mxu0 %v959
      %v1023 = vpop.f32.mrf.mxu0
      %v1024 = vadd.f32 0.0, %v1023
      %1025 = vdwg.mxu0
      %v1026 = vadd.f32 %v792, %v979
      %v1027 = vadd.f32 %v793, %v982
      %v1028 = vadd.f32 %v794, %v985
      %v1029 = vadd.f32 %v795, %v988
      %v1030 = vadd.f32 %v796, %v991
      %v1031 = vadd.f32 %v797, %v994
      %v1032 = vadd.f32 %v798, %v997
      %v1033 = vadd.f32 %v799, %v1000
      %v1034 = vadd.f32 %v800, %v1003
      %v1035 = vadd.f32 %v801, %v1006
      %v1036 = vadd.f32 %v802, %v1009
      %v1037 = vadd.f32 %v803, %v1012
      %v1038 = vadd.f32 %v804, %v1015
      %v1039 = vadd.f32 %v805, %v1018
      %v1040 = vadd.f32 %v806, %v1021
      %v1041 = vadd.f32 %v807, %v1024
      %s1042 = scalar_lea.vmem %s3, 8
      %v1043 = vld [vmem:[%s1042] sm:$0xff]
      %1044 = vmatpush.msra.mxu0 0.0
      %1045 = vmatpush.msra.mxu0 0.0
      %1046 = vmatpush.msra.mxu0 0.0
      %1047 = vmatpush.msra.mxu0 0.0
      %1048 = vmatpush.msra.mxu0 0.0
      %1049 = vmatpush.msra.mxu0 0.0
      %1050 = vmatpush.msra.mxu0 0.0
      %1051 = vmatpush.msra.mxu0 0.0
      %1052 = vmatpush.msra.mxu0 0.0
      %1053 = vmatpush.msra.mxu0 0.0
      %1054 = vmatpush.msra.mxu0 0.0
      %1055 = vmatpush.msra.mxu0 0.0
      %1056 = vmatpush.msra.mxu0 0.0
      %1057 = vmatpush.msra.mxu0 0.0
      %1058 = vmatpush.msra.mxu0 0.0
      %1059 = vmatpush.msra.mxu0 %v1043
      %1060 = vmatmul.f32.gmra.mxu0 %v914
      %v1061 = vpop.f32.mrf.mxu0
      %v1062 = vadd.f32 0.0, %v1061
      %1063 = vmatmul.f32.gmra.mxu0 %v917
      %v1064 = vpop.f32.mrf.mxu0
      %v1065 = vadd.f32 0.0, %v1064
      %1066 = vmatmul.f32.gmra.mxu0 %v920
      %v1067 = vpop.f32.mrf.mxu0
      %v1068 = vadd.f32 0.0, %v1067
      %1069 = vmatmul.f32.gmra.mxu0 %v923
      %v1070 = vpop.f32.mrf.mxu0
      %v1071 = vadd.f32 0.0, %v1070
      %1072 = vmatmul.f32.gmra.mxu0 %v926
      %v1073 = vpop.f32.mrf.mxu0
      %v1074 = vadd.f32 0.0, %v1073
      %1075 = vmatmul.f32.gmra.mxu0 %v929
      %v1076 = vpop.f32.mrf.mxu0
      %v1077 = vadd.f32 0.0, %v1076
      %1078 = vmatmul.f32.gmra.mxu0 %v932
      %v1079 = vpop.f32.mrf.mxu0
      %v1080 = vadd.f32 0.0, %v1079
      %1081 = vmatmul.f32.gmra.mxu0 %v935
      %v1082 = vpop.f32.mrf.mxu0
      %v1083 = vadd.f32 0.0, %v1082
      %1084 = vmatmul.f32.gmra.mxu0 %v938
      %v1085 = vpop.f32.mrf.mxu0
      %v1086 = vadd.f32 0.0, %v1085
      %1087 = vmatmul.f32.gmra.mxu0 %v941
      %v1088 = vpop.f32.mrf.mxu0
      %v1089 = vadd.f32 0.0, %v1088
      %1090 = vmatmul.f32.gmra.mxu0 %v944
      %v1091 = vpop.f32.mrf.mxu0
      %v1092 = vadd.f32 0.0, %v1091
      %1093 = vmatmul.f32.gmra.mxu0 %v947
      %v1094 = vpop.f32.mrf.mxu0
      %v1095 = vadd.f32 0.0, %v1094
      %1096 = vmatmul.f32.gmra.mxu0 %v950
      %v1097 = vpop.f32.mrf.mxu0
      %v1098 = vadd.f32 0.0, %v1097
      %1099 = vmatmul.f32.gmra.mxu0 %v953
      %v1100 = vpop.f32.mrf.mxu0
      %v1101 = vadd.f32 0.0, %v1100
      %1102 = vmatmul.f32.gmra.mxu0 %v956
      %v1103 = vpop.f32.mrf.mxu0
      %v1104 = vadd.f32 0.0, %v1103
      %1105 = vmatmul.f32.gmra.mxu0 %v959
      %v1106 = vpop.f32.mrf.mxu0
      %v1107 = vadd.f32 0.0, %v1106
      %1108 = vdwg.mxu0
      %v1109 = vadd.f32 %v875, %v1062
      %v1110 = vadd.f32 %v876, %v1065
      %v1111 = vadd.f32 %v877, %v1068
      %v1112 = vadd.f32 %v878, %v1071
      %v1113 = vadd.f32 %v879, %v1074
      %v1114 = vadd.f32 %v880, %v1077
      %v1115 = vadd.f32 %v881, %v1080
      %v1116 = vadd.f32 %v882, %v1083
      %v1117 = vadd.f32 %v883, %v1086
      %v1118 = vadd.f32 %v884, %v1089
      %v1119 = vadd.f32 %v885, %v1092
      %v1120 = vadd.f32 %v886, %v1095
      %v1121 = vadd.f32 %v887, %v1098
      %v1122 = vadd.f32 %v888, %v1101
      %v1123 = vadd.f32 %v889, %v1104
      %v1124 = vadd.f32 %v890, %v1107
      %s1125 = scalar_lea.vmem %s1, 32
      %v1126 = vld [vmem:[%s1125] sm:$0xff]
      %v1128 = vsel %vm335, %v907, 0
      %v1131 = vsel %vm335, %v908, 0
      %1133 = vmatpush.msra.mxu0 0.0
      %1134 = vmatpush.msra.mxu0 0.0
      %1135 = vmatpush.msra.mxu0 0.0
      %1136 = vmatpush.msra.mxu0 0.0
      %1137 = vmatpush.msra.mxu0 0.0
      %1138 = vmatpush.msra.mxu0 0.0
      %1139 = vmatpush.msra.mxu0 0.0
      %1140 = vmatpush.msra.mxu0 0.0
      %1141 = vmatpush.msra.mxu0 0.0
      %1142 = vmatpush.msra.mxu0 0.0
      %1143 = vmatpush.msra.mxu0 0.0
      %1144 = vmatpush.msra.mxu0 0.0
      %1145 = vmatpush.msra.mxu0 0.0
      %1146 = vmatpush.msra.mxu0 0.0
      %1147 = vmatpush.msra.mxu0 0.0
      %1148 = vmatpush.msra.mxu0 %v1126
      %1149 = vmatmul.f32.gmra.mxu0 %v920
      %v1150 = vpop.f32.mrf.mxu0
      %v1151 = vadd.f32 0.0, %v1150
      %1152 = vmatmul.f32.gmra.mxu0 %v923
      %v1153 = vpop.f32.mrf.mxu0
      %v1154 = vadd.f32 0.0, %v1153
      %1155 = vmatmul.f32.gmra.mxu0 %v926
      %v1156 = vpop.f32.mrf.mxu0
      %v1157 = vadd.f32 0.0, %v1156
      %1158 = vmatmul.f32.gmra.mxu0 %v929
      %v1159 = vpop.f32.mrf.mxu0
      %v1160 = vadd.f32 0.0, %v1159
      %1161 = vmatmul.f32.gmra.mxu0 %v932
      %v1162 = vpop.f32.mrf.mxu0
      %v1163 = vadd.f32 0.0, %v1162
      %1164 = vmatmul.f32.gmra.mxu0 %v935
      %v1165 = vpop.f32.mrf.mxu0
      %v1166 = vadd.f32 0.0, %v1165
      %1167 = vmatmul.f32.gmra.mxu0 %v938
      %v1168 = vpop.f32.mrf.mxu0
      %v1169 = vadd.f32 0.0, %v1168
      %1170 = vmatmul.f32.gmra.mxu0 %v941
      %v1171 = vpop.f32.mrf.mxu0
      %v1172 = vadd.f32 0.0, %v1171
      %1173 = vmatmul.f32.gmra.mxu0 %v944
      %v1174 = vpop.f32.mrf.mxu0
      %v1175 = vadd.f32 0.0, %v1174
      %1176 = vmatmul.f32.gmra.mxu0 %v947
      %v1177 = vpop.f32.mrf.mxu0
      %v1178 = vadd.f32 0.0, %v1177
      %1179 = vmatmul.f32.gmra.mxu0 %v950
      %v1180 = vpop.f32.mrf.mxu0
      %v1181 = vadd.f32 0.0, %v1180
      %1182 = vmatmul.f32.gmra.mxu0 %v953
      %v1183 = vpop.f32.mrf.mxu0
      %v1184 = vadd.f32 0.0, %v1183
      %1185 = vmatmul.f32.gmra.mxu0 %v956
      %v1186 = vpop.f32.mrf.mxu0
      %v1187 = vadd.f32 0.0, %v1186
      %1188 = vmatmul.f32.gmra.mxu0 %v959
      %v1189 = vpop.f32.mrf.mxu0
      %v1190 = vadd.f32 0.0, %v1189
      %1191 = vmatmul.f32.gmra.mxu0 %v1128
      %v1192 = vpop.f32.mrf.mxu0
      %v1193 = vadd.f32 0.0, %v1192
      %1194 = vmatmul.f32.gmra.mxu0 %v1131
      %v1195 = vpop.f32.mrf.mxu0
      %v1196 = vadd.f32 0.0, %v1195
      %1197 = vdwg.mxu0
      %v1198 = vadd.f32 %v1026, %v1151
      %v1199 = vadd.f32 %v1027, %v1154
      %v1200 = vadd.f32 %v1028, %v1157
      %v1201 = vadd.f32 %v1029, %v1160
      %v1202 = vadd.f32 %v1030, %v1163
      %v1203 = vadd.f32 %v1031, %v1166
      %v1204 = vadd.f32 %v1032, %v1169
      %v1205 = vadd.f32 %v1033, %v1172
      %v1206 = vadd.f32 %v1034, %v1175
      %v1207 = vadd.f32 %v1035, %v1178
      %v1208 = vadd.f32 %v1036, %v1181
      %v1209 = vadd.f32 %v1037, %v1184
      %v1210 = vadd.f32 %v1038, %v1187
      %v1211 = vadd.f32 %v1039, %v1190
      %v1212 = vadd.f32 %v1040, %v1193
      %v1213 = vadd.f32 %v1041, %v1196
      %s1214 = scalar_lea.vmem %s3, 32
      %v1215 = vld [vmem:[%s1214] sm:$0xff]
      %1216 = vmatpush.msra.mxu0 0.0
      %1217 = vmatpush.msra.mxu0 0.0
      %1218 = vmatpush.msra.mxu0 0.0
      %1219 = vmatpush.msra.mxu0 0.0
      %1220 = vmatpush.msra.mxu0 0.0
      %1221 = vmatpush.msra.mxu0 0.0
      %1222 = vmatpush.msra.mxu0 0.0
      %1223 = vmatpush.msra.mxu0 0.0
      %1224 = vmatpush.msra.mxu0 0.0
      %1225 = vmatpush.msra.mxu0 0.0
      %1226 = vmatpush.msra.mxu0 0.0
      %1227 = vmatpush.msra.mxu0 0.0
      %1228 = vmatpush.msra.mxu0 0.0
      %1229 = vmatpush.msra.mxu0 0.0
      %1230 = vmatpush.msra.mxu0 0.0
      %1231 = vmatpush.msra.mxu0 %v1215
      %1232 = vmatmul.f32.gmra.mxu0 %v920
      %v1233 = vpop.f32.mrf.mxu0
      %v1234 = vadd.f32 0.0, %v1233
      %1235 = vmatmul.f32.gmra.mxu0 %v923
      %v1236 = vpop.f32.mrf.mxu0
      %v1237 = vadd.f32 0.0, %v1236
      %1238 = vmatmul.f32.gmra.mxu0 %v926
      %v1239 = vpop.f32.mrf.mxu0
      %v1240 = vadd.f32 0.0, %v1239
      %1241 = vmatmul.f32.gmra.mxu0 %v929
      %v1242 = vpop.f32.mrf.mxu0
      %v1243 = vadd.f32 0.0, %v1242
      %1244 = vmatmul.f32.gmra.mxu0 %v932
      %v1245 = vpop.f32.mrf.mxu0
      %v1246 = vadd.f32 0.0, %v1245
      %1247 = vmatmul.f32.gmra.mxu0 %v935
      %v1248 = vpop.f32.mrf.mxu0
      %v1249 = vadd.f32 0.0, %v1248
      %1250 = vmatmul.f32.gmra.mxu0 %v938
      %v1251 = vpop.f32.mrf.mxu0
      %v1252 = vadd.f32 0.0, %v1251
      %1253 = vmatmul.f32.gmra.mxu0 %v941
      %v1254 = vpop.f32.mrf.mxu0
      %v1255 = vadd.f32 0.0, %v1254
      %1256 = vmatmul.f32.gmra.mxu0 %v944
      %v1257 = vpop.f32.mrf.mxu0
      %v1258 = vadd.f32 0.0, %v1257
      %1259 = vmatmul.f32.gmra.mxu0 %v947
      %v1260 = vpop.f32.mrf.mxu0
      %v1261 = vadd.f32 0.0, %v1260
      %1262 = vmatmul.f32.gmra.mxu0 %v950
      %v1263 = vpop.f32.mrf.mxu0
      %v1264 = vadd.f32 0.0, %v1263
      %1265 = vmatmul.f32.gmra.mxu0 %v953
      %v1266 = vpop.f32.mrf.mxu0
      %v1267 = vadd.f32 0.0, %v1266
      %1268 = vmatmul.f32.gmra.mxu0 %v956
      %v1269 = vpop.f32.mrf.mxu0
      %v1270 = vadd.f32 0.0, %v1269
      %1271 = vmatmul.f32.gmra.mxu0 %v959
      %v1272 = vpop.f32.mrf.mxu0
      %v1273 = vadd.f32 0.0, %v1272
      %1274 = vmatmul.f32.gmra.mxu0 %v1128
      %v1275 = vpop.f32.mrf.mxu0
      %v1276 = vadd.f32 0.0, %v1275
      %1277 = vmatmul.f32.gmra.mxu0 %v1131
      %v1278 = vpop.f32.mrf.mxu0
      %v1279 = vadd.f32 0.0, %v1278
      %1280 = vdwg.mxu0
      %v1281 = vadd.f32 %v1109, %v1234
      %v1282 = vadd.f32 %v1110, %v1237
      %v1283 = vadd.f32 %v1111, %v1240
      %v1284 = vadd.f32 %v1112, %v1243
      %v1285 = vadd.f32 %v1113, %v1246
      %v1286 = vadd.f32 %v1114, %v1249
      %v1287 = vadd.f32 %v1115, %v1252
      %v1288 = vadd.f32 %v1116, %v1255
      %v1289 = vadd.f32 %v1117, %v1258
      %v1290 = vadd.f32 %v1118, %v1261
      %v1291 = vadd.f32 %v1119, %v1264
      %v1292 = vadd.f32 %v1120, %v1267
      %v1293 = vadd.f32 %v1121, %v1270
      %v1294 = vadd.f32 %v1122, %v1273
      %v1295 = vadd.f32 %v1123, %v1276
      %v1296 = vadd.f32 %v1124, %v1279
      %s1297 = scalar_lea.vmem %s1, 56
      %v1298 = vld [vmem:[%s1297] sm:$0xff]
      %v1300 = vsel %vm335, %v909, 0
      %v1303 = vsel %vm335, %v910, 0
      %1305 = vmatpush.msra.mxu0 0.0
      %1306 = vmatpush.msra.mxu0 0.0
      %1307 = vmatpush.msra.mxu0 0.0
      %1308 = vmatpush.msra.mxu0 0.0
      %1309 = vmatpush.msra.mxu0 0.0
      %1310 = vmatpush.msra.mxu0 0.0
      %1311 = vmatpush.msra.mxu0 0.0
      %1312 = vmatpush.msra.mxu0 0.0
      %1313 = vmatpush.msra.mxu0 0.0
      %1314 = vmatpush.msra.mxu0 0.0
      %1315 = vmatpush.msra.mxu0 0.0
      %1316 = vmatpush.msra.mxu0 0.0
      %1317 = vmatpush.msra.mxu0 0.0
      %1318 = vmatpush.msra.mxu0 0.0
      %1319 = vmatpush.msra.mxu0 0.0
      %1320 = vmatpush.msra.mxu0 %v1298
      %1321 = vmatmul.f32.gmra.mxu0 %v926
      %v1322 = vpop.f32.mrf.mxu0
      %v1323 = vadd.f32 0.0, %v1322
      %1324 = vmatmul.f32.gmra.mxu0 %v929
      %v1325 = vpop.f32.mrf.mxu0
      %v1326 = vadd.f32 0.0, %v1325
      %1327 = vmatmul.f32.gmra.mxu0 %v932
      %v1328 = vpop.f32.mrf.mxu0
      %v1329 = vadd.f32 0.0, %v1328
      %1330 = vmatmul.f32.gmra.mxu0 %v935
      %v1331 = vpop.f32.mrf.mxu0
      %v1332 = vadd.f32 0.0, %v1331
      %1333 = vmatmul.f32.gmra.mxu0 %v938
      %v1334 = vpop.f32.mrf.mxu0
      %v1335 = vadd.f32 0.0, %v1334
      %1336 = vmatmul.f32.gmra.mxu0 %v941
      %v1337 = vpop.f32.mrf.mxu0
      %v1338 = vadd.f32 0.0, %v1337
      %1339 = vmatmul.f32.gmra.mxu0 %v944
      %v1340 = vpop.f32.mrf.mxu0
      %v1341 = vadd.f32 0.0, %v1340
      %1342 = vmatmul.f32.gmra.mxu0 %v947
      %v1343 = vpop.f32.mrf.mxu0
      %v1344 = vadd.f32 0.0, %v1343
      %1345 = vmatmul.f32.gmra.mxu0 %v950
      %v1346 = vpop.f32.mrf.mxu0
      %v1347 = vadd.f32 0.0, %v1346
      %1348 = vmatmul.f32.gmra.mxu0 %v953
      %v1349 = vpop.f32.mrf.mxu0
      %v1350 = vadd.f32 0.0, %v1349
      %1351 = vmatmul.f32.gmra.mxu0 %v956
      %v1352 = vpop.f32.mrf.mxu0
      %v1353 = vadd.f32 0.0, %v1352
      %1354 = vmatmul.f32.gmra.mxu0 %v959
      %v1355 = vpop.f32.mrf.mxu0
      %v1356 = vadd.f32 0.0, %v1355
      %1357 = vmatmul.f32.gmra.mxu0 %v1128
      %v1358 = vpop.f32.mrf.mxu0
      %v1359 = vadd.f32 0.0, %v1358
      %1360 = vmatmul.f32.gmra.mxu0 %v1131
      %v1361 = vpop.f32.mrf.mxu0
      %v1362 = vadd.f32 0.0, %v1361
      %1363 = vmatmul.f32.gmra.mxu0 %v1300
      %v1364 = vpop.f32.mrf.mxu0
      %v1365 = vadd.f32 0.0, %v1364
      %1366 = vmatmul.f32.gmra.mxu0 %v1303
      %v1367 = vpop.f32.mrf.mxu0
      %v1368 = vadd.f32 0.0, %v1367
      %1369 = vdwg.mxu0
      %v1370 = vadd.f32 %v1198, %v1323
      %v1371 = vadd.f32 %v1199, %v1326
      %v1372 = vadd.f32 %v1200, %v1329
      %v1373 = vadd.f32 %v1201, %v1332
      %v1374 = vadd.f32 %v1202, %v1335
      %v1375 = vadd.f32 %v1203, %v1338
      %v1376 = vadd.f32 %v1204, %v1341
      %v1377 = vadd.f32 %v1205, %v1344
      %v1378 = vadd.f32 %v1206, %v1347
      %v1379 = vadd.f32 %v1207, %v1350
      %v1380 = vadd.f32 %v1208, %v1353
      %v1381 = vadd.f32 %v1209, %v1356
      %v1382 = vadd.f32 %v1210, %v1359
      %v1383 = vadd.f32 %v1211, %v1362
      %v1384 = vadd.f32 %v1212, %v1365
      %v1385 = vadd.f32 %v1213, %v1368
      %s1386 = scalar_lea.vmem %s3, 56
      %v1387 = vld [vmem:[%s1386] sm:$0xff]
      %1388 = vmatpush.msra.mxu0 0.0
      %1389 = vmatpush.msra.mxu0 0.0
      %1390 = vmatpush.msra.mxu0 0.0
      %1391 = vmatpush.msra.mxu0 0.0
      %1392 = vmatpush.msra.mxu0 0.0
      %1393 = vmatpush.msra.mxu0 0.0
      %1394 = vmatpush.msra.mxu0 0.0
      %1395 = vmatpush.msra.mxu0 0.0
      %1396 = vmatpush.msra.mxu0 0.0
      %1397 = vmatpush.msra.mxu0 0.0
      %1398 = vmatpush.msra.mxu0 0.0
      %1399 = vmatpush.msra.mxu0 0.0
      %1400 = vmatpush.msra.mxu0 0.0
      %1401 = vmatpush.msra.mxu0 0.0
      %1402 = vmatpush.msra.mxu0 0.0
      %1403 = vmatpush.msra.mxu0 %v1387
      %1404 = vmatmul.f32.gmra.mxu0 %v926
      %v1405 = vpop.f32.mrf.mxu0
      %v1406 = vadd.f32 0.0, %v1405
      %1407 = vmatmul.f32.gmra.mxu0 %v929
      %v1408 = vpop.f32.mrf.mxu0
      %v1409 = vadd.f32 0.0, %v1408
      %1410 = vmatmul.f32.gmra.mxu0 %v932
      %v1411 = vpop.f32.mrf.mxu0
      %v1412 = vadd.f32 0.0, %v1411
      %1413 = vmatmul.f32.gmra.mxu0 %v935
      %v1414 = vpop.f32.mrf.mxu0
      %v1415 = vadd.f32 0.0, %v1414
      %1416 = vmatmul.f32.gmra.mxu0 %v938
      %v1417 = vpop.f32.mrf.mxu0
      %v1418 = vadd.f32 0.0, %v1417
      %1419 = vmatmul.f32.gmra.mxu0 %v941
      %v1420 = vpop.f32.mrf.mxu0
      %v1421 = vadd.f32 0.0, %v1420
      %1422 = vmatmul.f32.gmra.mxu0 %v944
      %v1423 = vpop.f32.mrf.mxu0
      %v1424 = vadd.f32 0.0, %v1423
      %1425 = vmatmul.f32.gmra.mxu0 %v947
      %v1426 = vpop.f32.mrf.mxu0
      %v1427 = vadd.f32 0.0, %v1426
      %1428 = vmatmul.f32.gmra.mxu0 %v950
      %v1429 = vpop.f32.mrf.mxu0
      %v1430 = vadd.f32 0.0, %v1429
      %1431 = vmatmul.f32.gmra.mxu0 %v953
      %v1432 = vpop.f32.mrf.mxu0
      %v1433 = vadd.f32 0.0, %v1432
      %1434 = vmatmul.f32.gmra.mxu0 %v956
      %v1435 = vpop.f32.mrf.mxu0
      %v1436 = vadd.f32 0.0, %v1435
      %1437 = vmatmul.f32.gmra.mxu0 %v959
      %v1438 = vpop.f32.mrf.mxu0
      %v1439 = vadd.f32 0.0, %v1438
      %1440 = vmatmul.f32.gmra.mxu0 %v1128
      %v1441 = vpop.f32.mrf.mxu0
      %v1442 = vadd.f32 0.0, %v1441
      %1443 = vmatmul.f32.gmra.mxu0 %v1131
      %v1444 = vpop.f32.mrf.mxu0
      %v1445 = vadd.f32 0.0, %v1444
      %1446 = vmatmul.f32.gmra.mxu0 %v1300
      %v1447 = vpop.f32.mrf.mxu0
      %v1448 = vadd.f32 0.0, %v1447
      %1449 = vmatmul.f32.gmra.mxu0 %v1303
      %v1450 = vpop.f32.mrf.mxu0
      %v1451 = vadd.f32 0.0, %v1450
      %1452 = vdwg.mxu0
      %v1453 = vadd.f32 %v1281, %v1406
      %v1454 = vadd.f32 %v1282, %v1409
      %v1455 = vadd.f32 %v1283, %v1412
      %v1456 = vadd.f32 %v1284, %v1415
      %v1457 = vadd.f32 %v1285, %v1418
      %v1458 = vadd.f32 %v1286, %v1421
      %v1459 = vadd.f32 %v1287, %v1424
      %v1460 = vadd.f32 %v1288, %v1427
      %v1461 = vadd.f32 %v1289, %v1430
      %v1462 = vadd.f32 %v1290, %v1433
      %v1463 = vadd.f32 %v1291, %v1436
      %v1464 = vadd.f32 %v1292, %v1439
      %v1465 = vadd.f32 %v1293, %v1442
      %v1466 = vadd.f32 %v1294, %v1445
      %v1467 = vadd.f32 %v1295, %v1448
      %v1468 = vadd.f32 %v1296, %v1451
      %v1469 = vld [vmem:[%s313 + $0x2] sm:$0xff]
      %v1470 = vld [vmem:[%s313 + $0xa] sm:$0xff]
      %v1471 = vld [vmem:[%s313 + $0x1a] sm:$0xff]
      %v1472 = vld [vmem:[%s313 + $0x22] sm:$0xff]
      %v1473 = vld [vmem:[%s313 + $0x32] sm:$0xff]
      %v1474 = vld [vmem:[%s313 + $0x3a] sm:$0xff]
      %v1475 = vld [vmem:[%s313 + $0x4a] sm:$0xff]
      %v1476 = vld [vmem:[%s313 + $0x52] sm:$0xff]
      %v1477 = vld [vmem:[%s313 + $0x62] sm:$0xff]
      %v1478 = vld [vmem:[%s313 + $0x6a] sm:$0xff]
      %v1479 = vld [vmem:[%s313 + $0x7a] sm:$0xff]
      %v1480 = vld [vmem:[%s313 + $0x82] sm:$0xff]
      %v1481 = vld [vmem:[%s313 + $0x92] sm:$0xff]
      %v1482 = vld [vmem:[%s313 + $0x9a] sm:$0xff]
      %v1483 = vld [vmem:[%s313 + $0xaa] sm:$0xff]
      %v1484 = vld [vmem:[%s313 + $0xb2] sm:$0xff]
      %v1485 = vld [vmem:[%s313 + $0xc2] sm:$0xff]
      %v1486 = vld [vmem:[%s313 + $0xca] sm:$0xff]
      %v1487 = vld [vmem:[%s313 + $0xda] sm:$0xff]
      %v1488 = vld [vmem:[%s313 + $0xe2] sm:$0xff]
      %s1489 = scalar_lea.vmem %s1, 16
      %v1490 = vld [vmem:[%s1489] sm:$0xff]
      %v1492 = vsel %vm335, %v1469, 0
      %v1495 = vsel %vm335, %v1470, 0
      %v1498 = vsel %vm335, %v1471, 0
      %v1501 = vsel %vm335, %v1472, 0
      %v1504 = vsel %vm335, %v1473, 0
      %v1507 = vsel %vm335, %v1474, 0
      %v1510 = vsel %vm335, %v1475, 0
      %v1513 = vsel %vm335, %v1476, 0
      %v1516 = vsel %vm335, %v1477, 0
      %v1519 = vsel %vm335, %v1478, 0
      %v1522 = vsel %vm335, %v1479, 0
      %v1525 = vsel %vm335, %v1480, 0
      %v1528 = vsel %vm335, %v1481, 0
      %v1531 = vsel %vm335, %v1482, 0
      %v1534 = vsel %vm335, %v1483, 0
      %v1537 = vsel %vm335, %v1484, 0
      %1539 = vmatpush.msra.mxu0 0.0
      %1540 = vmatpush.msra.mxu0 0.0
      %1541 = vmatpush.msra.mxu0 0.0
      %1542 = vmatpush.msra.mxu0 0.0
      %1543 = vmatpush.msra.mxu0 0.0
      %1544 = vmatpush.msra.mxu0 0.0
      %1545 = vmatpush.msra.mxu0 0.0
      %1546 = vmatpush.msra.mxu0 0.0
      %1547 = vmatpush.msra.mxu0 0.0
      %1548 = vmatpush.msra.mxu0 0.0
      %1549 = vmatpush.msra.mxu0 0.0
      %1550 = vmatpush.msra.mxu0 0.0
      %1551 = vmatpush.msra.mxu0 0.0
      %1552 = vmatpush.msra.mxu0 0.0
      %1553 = vmatpush.msra.mxu0 0.0
      %1554 = vmatpush.msra.mxu0 %v1490
      %1555 = vmatmul.f32.gmra.mxu0 %v1492
      %v1556 = vpop.f32.mrf.mxu0
      %v1557 = vadd.f32 0.0, %v1556
      %1558 = vmatmul.f32.gmra.mxu0 %v1495
      %v1559 = vpop.f32.mrf.mxu0
      %v1560 = vadd.f32 0.0, %v1559
      %1561 = vmatmul.f32.gmra.mxu0 %v1498
      %v1562 = vpop.f32.mrf.mxu0
      %v1563 = vadd.f32 0.0, %v1562
      %1564 = vmatmul.f32.gmra.mxu0 %v1501
      %v1565 = vpop.f32.mrf.mxu0
      %v1566 = vadd.f32 0.0, %v1565
      %1567 = vmatmul.f32.gmra.mxu0 %v1504
      %v1568 = vpop.f32.mrf.mxu0
      %v1569 = vadd.f32 0.0, %v1568
      %1570 = vmatmul.f32.gmra.mxu0 %v1507
      %v1571 = vpop.f32.mrf.mxu0
      %v1572 = vadd.f32 0.0, %v1571
      %1573 = vmatmul.f32.gmra.mxu0 %v1510
      %v1574 = vpop.f32.mrf.mxu0
      %v1575 = vadd.f32 0.0, %v1574
      %1576 = vmatmul.f32.gmra.mxu0 %v1513
      %v1577 = vpop.f32.mrf.mxu0
      %v1578 = vadd.f32 0.0, %v1577
      %1579 = vmatmul.f32.gmra.mxu0 %v1516
      %v1580 = vpop.f32.mrf.mxu0
      %v1581 = vadd.f32 0.0, %v1580
      %1582 = vmatmul.f32.gmra.mxu0 %v1519
      %v1583 = vpop.f32.mrf.mxu0
      %v1584 = vadd.f32 0.0, %v1583
      %1585 = vmatmul.f32.gmra.mxu0 %v1522
      %v1586 = vpop.f32.mrf.mxu0
      %v1587 = vadd.f32 0.0, %v1586
      %1588 = vmatmul.f32.gmra.mxu0 %v1525
      %v1589 = vpop.f32.mrf.mxu0
      %v1590 = vadd.f32 0.0, %v1589
      %1591 = vmatmul.f32.gmra.mxu0 %v1528
      %v1592 = vpop.f32.mrf.mxu0
      %v1593 = vadd.f32 0.0, %v1592
      %1594 = vmatmul.f32.gmra.mxu0 %v1531
      %v1595 = vpop.f32.mrf.mxu0
      %v1596 = vadd.f32 0.0, %v1595
      %1597 = vmatmul.f32.gmra.mxu0 %v1534
      %v1598 = vpop.f32.mrf.mxu0
      %v1599 = vadd.f32 0.0, %v1598
      %1600 = vmatmul.f32.gmra.mxu0 %v1537
      %v1601 = vpop.f32.mrf.mxu0
      %v1602 = vadd.f32 0.0, %v1601
      %1603 = vdwg.mxu0
      %v1604 = vadd.f32 %v1370, %v1557
      %v1605 = vadd.f32 %v1371, %v1560
      %v1606 = vadd.f32 %v1372, %v1563
      %v1607 = vadd.f32 %v1373, %v1566
      %v1608 = vadd.f32 %v1374, %v1569
      %v1609 = vadd.f32 %v1375, %v1572
      %v1610 = vadd.f32 %v1376, %v1575
      %v1611 = vadd.f32 %v1377, %v1578
      %v1612 = vadd.f32 %v1378, %v1581
      %v1613 = vadd.f32 %v1379, %v1584
      %v1614 = vadd.f32 %v1380, %v1587
      %v1615 = vadd.f32 %v1381, %v1590
      %v1616 = vadd.f32 %v1382, %v1593
      %v1617 = vadd.f32 %v1383, %v1596
      %v1618 = vadd.f32 %v1384, %v1599
      %v1619 = vadd.f32 %v1385, %v1602
      %s1620 = scalar_lea.vmem %s3, 16
      %v1621 = vld [vmem:[%s1620] sm:$0xff]
      %1622 = vmatpush.msra.mxu0 0.0
      %1623 = vmatpush.msra.mxu0 0.0
      %1624 = vmatpush.msra.mxu0 0.0
      %1625 = vmatpush.msra.mxu0 0.0
      %1626 = vmatpush.msra.mxu0 0.0
      %1627 = vmatpush.msra.mxu0 0.0
      %1628 = vmatpush.msra.mxu0 0.0
      %1629 = vmatpush.msra.mxu0 0.0
      %1630 = vmatpush.msra.mxu0 0.0
      %1631 = vmatpush.msra.mxu0 0.0
      %1632 = vmatpush.msra.mxu0 0.0
      %1633 = vmatpush.msra.mxu0 0.0
      %1634 = vmatpush.msra.mxu0 0.0
      %1635 = vmatpush.msra.mxu0 0.0
      %1636 = vmatpush.msra.mxu0 0.0
      %1637 = vmatpush.msra.mxu0 %v1621
      %1638 = vmatmul.f32.gmra.mxu0 %v1492
      %v1639 = vpop.f32.mrf.mxu0
      %v1640 = vadd.f32 0.0, %v1639
      %1641 = vmatmul.f32.gmra.mxu0 %v1495
      %v1642 = vpop.f32.mrf.mxu0
      %v1643 = vadd.f32 0.0, %v1642
      %1644 = vmatmul.f32.gmra.mxu0 %v1498
      %v1645 = vpop.f32.mrf.mxu0
      %v1646 = vadd.f32 0.0, %v1645
      %1647 = vmatmul.f32.gmra.mxu0 %v1501
      %v1648 = vpop.f32.mrf.mxu0
      %v1649 = vadd.f32 0.0, %v1648
      %1650 = vmatmul.f32.gmra.mxu0 %v1504
      %v1651 = vpop.f32.mrf.mxu0
      %v1652 = vadd.f32 0.0, %v1651
      %1653 = vmatmul.f32.gmra.mxu0 %v1507
      %v1654 = vpop.f32.mrf.mxu0
      %v1655 = vadd.f32 0.0, %v1654
      %1656 = vmatmul.f32.gmra.mxu0 %v1510
      %v1657 = vpop.f32.mrf.mxu0
      %v1658 = vadd.f32 0.0, %v1657
      %1659 = vmatmul.f32.gmra.mxu0 %v1513
      %v1660 = vpop.f32.mrf.mxu0
      %v1661 = vadd.f32 0.0, %v1660
      %1662 = vmatmul.f32.gmra.mxu0 %v1516
      %v1663 = vpop.f32.mrf.mxu0
      %v1664 = vadd.f32 0.0, %v1663
      %1665 = vmatmul.f32.gmra.mxu0 %v1519
      %v1666 = vpop.f32.mrf.mxu0
      %v1667 = vadd.f32 0.0, %v1666
      %1668 = vmatmul.f32.gmra.mxu0 %v1522
      %v1669 = vpop.f32.mrf.mxu0
      %v1670 = vadd.f32 0.0, %v1669
      %1671 = vmatmul.f32.gmra.mxu0 %v1525
      %v1672 = vpop.f32.mrf.mxu0
      %v1673 = vadd.f32 0.0, %v1672
      %1674 = vmatmul.f32.gmra.mxu0 %v1528
      %v1675 = vpop.f32.mrf.mxu0
      %v1676 = vadd.f32 0.0, %v1675
      %1677 = vmatmul.f32.gmra.mxu0 %v1531
      %v1678 = vpop.f32.mrf.mxu0
      %v1679 = vadd.f32 0.0, %v1678
      %1680 = vmatmul.f32.gmra.mxu0 %v1534
      %v1681 = vpop.f32.mrf.mxu0
      %v1682 = vadd.f32 0.0, %v1681
      %1683 = vmatmul.f32.gmra.mxu0 %v1537
      %v1684 = vpop.f32.mrf.mxu0
      %v1685 = vadd.f32 0.0, %v1684
      %1686 = vdwg.mxu0
      %v1687 = vadd.f32 %v1453, %v1640
      %v1688 = vadd.f32 %v1454, %v1643
      %v1689 = vadd.f32 %v1455, %v1646
      %v1690 = vadd.f32 %v1456, %v1649
      %v1691 = vadd.f32 %v1457, %v1652
      %v1692 = vadd.f32 %v1458, %v1655
      %v1693 = vadd.f32 %v1459, %v1658
      %v1694 = vadd.f32 %v1460, %v1661
      %v1695 = vadd.f32 %v1461, %v1664
      %v1696 = vadd.f32 %v1462, %v1667
      %v1697 = vadd.f32 %v1463, %v1670
      %v1698 = vadd.f32 %v1464, %v1673
      %v1699 = vadd.f32 %v1465, %v1676
      %v1700 = vadd.f32 %v1466, %v1679
      %v1701 = vadd.f32 %v1467, %v1682
      %v1702 = vadd.f32 %v1468, %v1685
      %s1703 = scalar_lea.vmem %s1, 40
      %v1704 = vld [vmem:[%s1703] sm:$0xff]
      %v1706 = vsel %vm335, %v1485, 0
      %v1709 = vsel %vm335, %v1486, 0
      %1711 = vmatpush.msra.mxu0 0.0
      %1712 = vmatpush.msra.mxu0 0.0
      %1713 = vmatpush.msra.mxu0 0.0
      %1714 = vmatpush.msra.mxu0 0.0
      %1715 = vmatpush.msra.mxu0 0.0
      %1716 = vmatpush.msra.mxu0 0.0
      %1717 = vmatpush.msra.mxu0 0.0
      %1718 = vmatpush.msra.mxu0 0.0
      %1719 = vmatpush.msra.mxu0 0.0
      %1720 = vmatpush.msra.mxu0 0.0
      %1721 = vmatpush.msra.mxu0 0.0
      %1722 = vmatpush.msra.mxu0 0.0
      %1723 = vmatpush.msra.mxu0 0.0
      %1724 = vmatpush.msra.mxu0 0.0
      %1725 = vmatpush.msra.mxu0 0.0
      %1726 = vmatpush.msra.mxu0 %v1704
      %1727 = vmatmul.f32.gmra.mxu0 %v1498
      %v1728 = vpop.f32.mrf.mxu0
      %v1729 = vadd.f32 0.0, %v1728
      %1730 = vmatmul.f32.gmra.mxu0 %v1501
      %v1731 = vpop.f32.mrf.mxu0
      %v1732 = vadd.f32 0.0, %v1731
      %1733 = vmatmul.f32.gmra.mxu0 %v1504
      %v1734 = vpop.f32.mrf.mxu0
      %v1735 = vadd.f32 0.0, %v1734
      %1736 = vmatmul.f32.gmra.mxu0 %v1507
      %v1737 = vpop.f32.mrf.mxu0
      %v1738 = vadd.f32 0.0, %v1737
      %1739 = vmatmul.f32.gmra.mxu0 %v1510
      %v1740 = vpop.f32.mrf.mxu0
      %v1741 = vadd.f32 0.0, %v1740
      %1742 = vmatmul.f32.gmra.mxu0 %v1513
      %v1743 = vpop.f32.mrf.mxu0
      %v1744 = vadd.f32 0.0, %v1743
      %1745 = vmatmul.f32.gmra.mxu0 %v1516
      %v1746 = vpop.f32.mrf.mxu0
      %v1747 = vadd.f32 0.0, %v1746
      %1748 = vmatmul.f32.gmra.mxu0 %v1519
      %v1749 = vpop.f32.mrf.mxu0
      %v1750 = vadd.f32 0.0, %v1749
      %1751 = vmatmul.f32.gmra.mxu0 %v1522
      %v1752 = vpop.f32.mrf.mxu0
      %v1753 = vadd.f32 0.0, %v1752
      %1754 = vmatmul.f32.gmra.mxu0 %v1525
      %v1755 = vpop.f32.mrf.mxu0
      %v1756 = vadd.f32 0.0, %v1755
      %1757 = vmatmul.f32.gmra.mxu0 %v1528
      %v1758 = vpop.f32.mrf.mxu0
      %v1759 = vadd.f32 0.0, %v1758
      %1760 = vmatmul.f32.gmra.mxu0 %v1531
      %v1761 = vpop.f32.mrf.mxu0
      %v1762 = vadd.f32 0.0, %v1761
      %1763 = vmatmul.f32.gmra.mxu0 %v1534
      %v1764 = vpop.f32.mrf.mxu0
      %v1765 = vadd.f32 0.0, %v1764
      %1766 = vmatmul.f32.gmra.mxu0 %v1537
      %v1767 = vpop.f32.mrf.mxu0
      %v1768 = vadd.f32 0.0, %v1767
      %1769 = vmatmul.f32.gmra.mxu0 %v1706
      %v1770 = vpop.f32.mrf.mxu0
      %v1771 = vadd.f32 0.0, %v1770
      %1772 = vmatmul.f32.gmra.mxu0 %v1709
      %v1773 = vpop.f32.mrf.mxu0
      %v1774 = vadd.f32 0.0, %v1773
      %1775 = vdwg.mxu0
      %v1776 = vadd.f32 %v1604, %v1729
      %v1777 = vadd.f32 %v1605, %v1732
      %v1778 = vadd.f32 %v1606, %v1735
      %v1779 = vadd.f32 %v1607, %v1738
      %v1780 = vadd.f32 %v1608, %v1741
      %v1781 = vadd.f32 %v1609, %v1744
      %v1782 = vadd.f32 %v1610, %v1747
      %v1783 = vadd.f32 %v1611, %v1750
      %v1784 = vadd.f32 %v1612, %v1753
      %v1785 = vadd.f32 %v1613, %v1756
      %v1786 = vadd.f32 %v1614, %v1759
      %v1787 = vadd.f32 %v1615, %v1762
      %v1788 = vadd.f32 %v1616, %v1765
      %v1789 = vadd.f32 %v1617, %v1768
      %v1790 = vadd.f32 %v1618, %v1771
      %v1791 = vadd.f32 %v1619, %v1774
      %s1792 = scalar_lea.vmem %s3, 40
      %v1793 = vld [vmem:[%s1792] sm:$0xff]
      %1794 = vmatpush.msra.mxu0 0.0
      %1795 = vmatpush.msra.mxu0 0.0
      %1796 = vmatpush.msra.mxu0 0.0
      %1797 = vmatpush.msra.mxu0 0.0
      %1798 = vmatpush.msra.mxu0 0.0
      %1799 = vmatpush.msra.mxu0 0.0
      %1800 = vmatpush.msra.mxu0 0.0
      %1801 = vmatpush.msra.mxu0 0.0
      %1802 = vmatpush.msra.mxu0 0.0
      %1803 = vmatpush.msra.mxu0 0.0
      %1804 = vmatpush.msra.mxu0 0.0
      %1805 = vmatpush.msra.mxu0 0.0
      %1806 = vmatpush.msra.mxu0 0.0
      %1807 = vmatpush.msra.mxu0 0.0
      %1808 = vmatpush.msra.mxu0 0.0
      %1809 = vmatpush.msra.mxu0 %v1793
      %1810 = vmatmul.f32.gmra.mxu0 %v1498
      %v1811 = vpop.f32.mrf.mxu0
      %v1812 = vadd.f32 0.0, %v1811
      %1813 = vmatmul.f32.gmra.mxu0 %v1501
      %v1814 = vpop.f32.mrf.mxu0
      %v1815 = vadd.f32 0.0, %v1814
      %1816 = vmatmul.f32.gmra.mxu0 %v1504
      %v1817 = vpop.f32.mrf.mxu0
      %v1818 = vadd.f32 0.0, %v1817
      %1819 = vmatmul.f32.gmra.mxu0 %v1507
      %v1820 = vpop.f32.mrf.mxu0
      %v1821 = vadd.f32 0.0, %v1820
      %1822 = vmatmul.f32.gmra.mxu0 %v1510
      %v1823 = vpop.f32.mrf.mxu0
      %v1824 = vadd.f32 0.0, %v1823
      %1825 = vmatmul.f32.gmra.mxu0 %v1513
      %v1826 = vpop.f32.mrf.mxu0
      %v1827 = vadd.f32 0.0, %v1826
      %1828 = vmatmul.f32.gmra.mxu0 %v1516
      %v1829 = vpop.f32.mrf.mxu0
      %v1830 = vadd.f32 0.0, %v1829
      %1831 = vmatmul.f32.gmra.mxu0 %v1519
      %v1832 = vpop.f32.mrf.mxu0
      %v1833 = vadd.f32 0.0, %v1832
      %1834 = vmatmul.f32.gmra.mxu0 %v1522
      %v1835 = vpop.f32.mrf.mxu0
      %v1836 = vadd.f32 0.0, %v1835
      %1837 = vmatmul.f32.gmra.mxu0 %v1525
      %v1838 = vpop.f32.mrf.mxu0
      %v1839 = vadd.f32 0.0, %v1838
      %1840 = vmatmul.f32.gmra.mxu0 %v1528
      %v1841 = vpop.f32.mrf.mxu0
      %v1842 = vadd.f32 0.0, %v1841
      %1843 = vmatmul.f32.gmra.mxu0 %v1531
      %v1844 = vpop.f32.mrf.mxu0
      %v1845 = vadd.f32 0.0, %v1844
      %1846 = vmatmul.f32.gmra.mxu0 %v1534
      %v1847 = vpop.f32.mrf.mxu0
      %v1848 = vadd.f32 0.0, %v1847
      %1849 = vmatmul.f32.gmra.mxu0 %v1537
      %v1850 = vpop.f32.mrf.mxu0
      %v1851 = vadd.f32 0.0, %v1850
      %1852 = vmatmul.f32.gmra.mxu0 %v1706
      %v1853 = vpop.f32.mrf.mxu0
      %v1854 = vadd.f32 0.0, %v1853
      %1855 = vmatmul.f32.gmra.mxu0 %v1709
      %v1856 = vpop.f32.mrf.mxu0
      %v1857 = vadd.f32 0.0, %v1856
      %1858 = vdwg.mxu0
      %v1859 = vadd.f32 %v1687, %v1812
      %v1860 = vadd.f32 %v1688, %v1815
      %v1861 = vadd.f32 %v1689, %v1818
      %v1862 = vadd.f32 %v1690, %v1821
      %v1863 = vadd.f32 %v1691, %v1824
      %v1864 = vadd.f32 %v1692, %v1827
      %v1865 = vadd.f32 %v1693, %v1830
      %v1866 = vadd.f32 %v1694, %v1833
      %v1867 = vadd.f32 %v1695, %v1836
      %v1868 = vadd.f32 %v1696, %v1839
      %v1869 = vadd.f32 %v1697, %v1842
      %v1870 = vadd.f32 %v1698, %v1845
      %v1871 = vadd.f32 %v1699, %v1848
      %v1872 = vadd.f32 %v1700, %v1851
      %v1873 = vadd.f32 %v1701, %v1854
      %v1874 = vadd.f32 %v1702, %v1857
      %s1875 = scalar_lea.vmem %s1, 64
      %v1876 = vld [vmem:[%s1875] sm:$0xff]
      %v1878 = vsel %vm335, %v1487, 0
      %v1881 = vsel %vm335, %v1488, 0
      %1883 = vmatpush.msra.mxu0 0.0
      %1884 = vmatpush.msra.mxu0 0.0
      %1885 = vmatpush.msra.mxu0 0.0
      %1886 = vmatpush.msra.mxu0 0.0
      %1887 = vmatpush.msra.mxu0 0.0
      %1888 = vmatpush.msra.mxu0 0.0
      %1889 = vmatpush.msra.mxu0 0.0
      %1890 = vmatpush.msra.mxu0 0.0
      %1891 = vmatpush.msra.mxu0 0.0
      %1892 = vmatpush.msra.mxu0 0.0
      %1893 = vmatpush.msra.mxu0 0.0
      %1894 = vmatpush.msra.mxu0 0.0
      %1895 = vmatpush.msra.mxu0 0.0
      %1896 = vmatpush.msra.mxu0 0.0
      %1897 = vmatpush.msra.mxu0 0.0
      %1898 = vmatpush.msra.mxu0 %v1876
      %1899 = vmatmul.f32.gmra.mxu0 %v1504
      %v1900 = vpop.f32.mrf.mxu0
      %v1901 = vadd.f32 0.0, %v1900
      %1902 = vmatmul.f32.gmra.mxu0 %v1507
      %v1903 = vpop.f32.mrf.mxu0
      %v1904 = vadd.f32 0.0, %v1903
      %1905 = vmatmul.f32.gmra.mxu0 %v1510
      %v1906 = vpop.f32.mrf.mxu0
      %v1907 = vadd.f32 0.0, %v1906
      %1908 = vmatmul.f32.gmra.mxu0 %v1513
      %v1909 = vpop.f32.mrf.mxu0
      %v1910 = vadd.f32 0.0, %v1909
      %1911 = vmatmul.f32.gmra.mxu0 %v1516
      %v1912 = vpop.f32.mrf.mxu0
      %v1913 = vadd.f32 0.0, %v1912
      %1914 = vmatmul.f32.gmra.mxu0 %v1519
      %v1915 = vpop.f32.mrf.mxu0
      %v1916 = vadd.f32 0.0, %v1915
      %1917 = vmatmul.f32.gmra.mxu0 %v1522
      %v1918 = vpop.f32.mrf.mxu0
      %v1919 = vadd.f32 0.0, %v1918
      %1920 = vmatmul.f32.gmra.mxu0 %v1525
      %v1921 = vpop.f32.mrf.mxu0
      %v1922 = vadd.f32 0.0, %v1921
      %1923 = vmatmul.f32.gmra.mxu0 %v1528
      %v1924 = vpop.f32.mrf.mxu0
      %v1925 = vadd.f32 0.0, %v1924
      %1926 = vmatmul.f32.gmra.mxu0 %v1531
      %v1927 = vpop.f32.mrf.mxu0
      %v1928 = vadd.f32 0.0, %v1927
      %1929 = vmatmul.f32.gmra.mxu0 %v1534
      %v1930 = vpop.f32.mrf.mxu0
      %v1931 = vadd.f32 0.0, %v1930
      %1932 = vmatmul.f32.gmra.mxu0 %v1537
      %v1933 = vpop.f32.mrf.mxu0
      %v1934 = vadd.f32 0.0, %v1933
      %1935 = vmatmul.f32.gmra.mxu0 %v1706
      %v1936 = vpop.f32.mrf.mxu0
      %v1937 = vadd.f32 0.0, %v1936
      %1938 = vmatmul.f32.gmra.mxu0 %v1709
      %v1939 = vpop.f32.mrf.mxu0
      %v1940 = vadd.f32 0.0, %v1939
      %1941 = vmatmul.f32.gmra.mxu0 %v1878
      %v1942 = vpop.f32.mrf.mxu0
      %v1943 = vadd.f32 0.0, %v1942
      %1944 = vmatmul.f32.gmra.mxu0 %v1881
      %v1945 = vpop.f32.mrf.mxu0
      %v1946 = vadd.f32 0.0, %v1945
      %1947 = vdwg.mxu0
      %v1948 = vadd.f32 %v1776, %v1901
      %v1949 = vadd.f32 %v1777, %v1904
      %v1950 = vadd.f32 %v1778, %v1907
      %v1951 = vadd.f32 %v1779, %v1910
      %v1952 = vadd.f32 %v1780, %v1913
      %v1953 = vadd.f32 %v1781, %v1916
      %v1954 = vadd.f32 %v1782, %v1919
      %v1955 = vadd.f32 %v1783, %v1922
      %v1956 = vadd.f32 %v1784, %v1925
      %v1957 = vadd.f32 %v1785, %v1928
      %v1958 = vadd.f32 %v1786, %v1931
      %v1959 = vadd.f32 %v1787, %v1934
      %v1960 = vadd.f32 %v1788, %v1937
      %v1961 = vadd.f32 %v1789, %v1940
      %v1962 = vadd.f32 %v1790, %v1943
      %v1963 = vadd.f32 %v1791, %v1946
      %s1964 = scalar_lea.vmem %s3, 64
      %v1965 = vld [vmem:[%s1964] sm:$0xff]
      %1966 = vmatpush.msra.mxu0 0.0
      %1967 = vmatpush.msra.mxu0 0.0
      %1968 = vmatpush.msra.mxu0 0.0
      %1969 = vmatpush.msra.mxu0 0.0
      %1970 = vmatpush.msra.mxu0 0.0
      %1971 = vmatpush.msra.mxu0 0.0
      %1972 = vmatpush.msra.mxu0 0.0
      %1973 = vmatpush.msra.mxu0 0.0
      %1974 = vmatpush.msra.mxu0 0.0
      %1975 = vmatpush.msra.mxu0 0.0
      %1976 = vmatpush.msra.mxu0 0.0
      %1977 = vmatpush.msra.mxu0 0.0
      %1978 = vmatpush.msra.mxu0 0.0
      %1979 = vmatpush.msra.mxu0 0.0
      %1980 = vmatpush.msra.mxu0 0.0
      %1981 = vmatpush.msra.mxu0 %v1965
      %1982 = vmatmul.f32.gmra.mxu0 %v1504
      %v1983 = vpop.f32.mrf.mxu0
      %v1984 = vadd.f32 0.0, %v1983
      %1985 = vmatmul.f32.gmra.mxu0 %v1507
      %v1986 = vpop.f32.mrf.mxu0
      %v1987 = vadd.f32 0.0, %v1986
      %1988 = vmatmul.f32.gmra.mxu0 %v1510
      %v1989 = vpop.f32.mrf.mxu0
      %v1990 = vadd.f32 0.0, %v1989
      %1991 = vmatmul.f32.gmra.mxu0 %v1513
      %v1992 = vpop.f32.mrf.mxu0
      %v1993 = vadd.f32 0.0, %v1992
      %1994 = vmatmul.f32.gmra.mxu0 %v1516
      %v1995 = vpop.f32.mrf.mxu0
      %v1996 = vadd.f32 0.0, %v1995
      %1997 = vmatmul.f32.gmra.mxu0 %v1519
      %v1998 = vpop.f32.mrf.mxu0
      %v1999 = vadd.f32 0.0, %v1998
      %2000 = vmatmul.f32.gmra.mxu0 %v1522
      %v2001 = vpop.f32.mrf.mxu0
      %v2002 = vadd.f32 0.0, %v2001
      %2003 = vmatmul.f32.gmra.mxu0 %v1525
      %v2004 = vpop.f32.mrf.mxu0
      %v2005 = vadd.f32 0.0, %v2004
      %2006 = vmatmul.f32.gmra.mxu0 %v1528
      %v2007 = vpop.f32.mrf.mxu0
      %v2008 = vadd.f32 0.0, %v2007
      %2009 = vmatmul.f32.gmra.mxu0 %v1531
      %v2010 = vpop.f32.mrf.mxu0
      %v2011 = vadd.f32 0.0, %v2010
      %2012 = vmatmul.f32.gmra.mxu0 %v1534
      %v2013 = vpop.f32.mrf.mxu0
      %v2014 = vadd.f32 0.0, %v2013
      %2015 = vmatmul.f32.gmra.mxu0 %v1537
      %v2016 = vpop.f32.mrf.mxu0
      %v2017 = vadd.f32 0.0, %v2016
      %2018 = vmatmul.f32.gmra.mxu0 %v1706
      %v2019 = vpop.f32.mrf.mxu0
      %v2020 = vadd.f32 0.0, %v2019
      %2021 = vmatmul.f32.gmra.mxu0 %v1709
      %v2022 = vpop.f32.mrf.mxu0
      %v2023 = vadd.f32 0.0, %v2022
      %2024 = vmatmul.f32.gmra.mxu0 %v1878
      %v2025 = vpop.f32.mrf.mxu0
      %v2026 = vadd.f32 0.0, %v2025
      %2027 = vmatmul.f32.gmra.mxu0 %v1881
      %v2028 = vpop.f32.mrf.mxu0
      %v2029 = vadd.f32 0.0, %v2028
      %2030 = vdwg.mxu0
      %v2031 = vadd.f32 %v1859, %v1984
      %v2032 = vadd.f32 %v1860, %v1987
      %v2033 = vadd.f32 %v1861, %v1990
      %v2034 = vadd.f32 %v1862, %v1993
      %v2035 = vadd.f32 %v1863, %v1996
      %v2036 = vadd.f32 %v1864, %v1999
      %v2037 = vadd.f32 %v1865, %v2002
      %v2038 = vadd.f32 %v1866, %v2005
      %v2039 = vadd.f32 %v1867, %v2008
      %v2040 = vadd.f32 %v1868, %v2011
      %v2041 = vadd.f32 %v1869, %v2014
      %v2042 = vadd.f32 %v1870, %v2017
      %v2043 = vadd.f32 %v1871, %v2020
      %v2044 = vadd.f32 %v1872, %v2023
      %v2045 = vadd.f32 %v1873, %v2026
      %v2046 = vadd.f32 %v1874, %v2029
      %vm2047 = vcmask 31744
      %2048 = vst.msk [vmem:[%s290] sm:$0xff] %vm2047, %v1948
      %2049 = vst.msk [vmem:[%s290 + $0x8] sm:$0xff] %vm2047, %v1949
      %2050 = vst.msk [vmem:[%s290 + $0x10] sm:$0xff] %vm2047, %v1950
      %2051 = vst.msk [vmem:[%s290 + $0x18] sm:$0xff] %vm2047, %v1951
      %2052 = vst.msk [vmem:[%s290 + $0x20] sm:$0xff] %vm2047, %v1952
      %2053 = vst.msk [vmem:[%s290 + $0x28] sm:$0xff] %vm2047, %v1953
      %2054 = vst.msk [vmem:[%s290 + $0x30] sm:$0xff] %vm2047, %v1954
      %2055 = vst.msk [vmem:[%s290 + $0x38] sm:$0xff] %vm2047, %v1955
      %2056 = vst.msk [vmem:[%s290 + $0x40] sm:$0xff] %vm2047, %v1956
      %2057 = vst.msk [vmem:[%s290 + $0x48] sm:$0xff] %vm2047, %v1957
      %2058 = vst.msk [vmem:[%s290 + $0x50] sm:$0xff] %vm2047, %v1958
      %2059 = vst.msk [vmem:[%s290 + $0x58] sm:$0xff] %vm2047, %v1959
      %2060 = vst.msk [vmem:[%s290 + $0x60] sm:$0xff] %vm2047, %v1960
      %2061 = vst.msk [vmem:[%s290 + $0x68] sm:$0xff] %vm2047, %v1961
      %2062 = vst.msk [vmem:[%s290 + $0x70] sm:$0xff] %vm2047, %v1962
      %2063 = vst.msk [vmem:[%s290 + $0x78] sm:$0xff] %vm2047, %v1963
      %2064 = vst.msk [vmem:[%s301] sm:$0xff] %vm335, %v2031
      %2065 = vst.msk [vmem:[%s301 + $0x8] sm:$0xff] %vm335, %v2032
      %2066 = vst.msk [vmem:[%s301 + $0x10] sm:$0xff] %vm335, %v2033
      %2067 = vst.msk [vmem:[%s301 + $0x18] sm:$0xff] %vm335, %v2034
      %2068 = vst.msk [vmem:[%s301 + $0x20] sm:$0xff] %vm335, %v2035
      %2069 = vst.msk [vmem:[%s301 + $0x28] sm:$0xff] %vm335, %v2036
      %2070 = vst.msk [vmem:[%s301 + $0x30] sm:$0xff] %vm335, %v2037
      %2071 = vst.msk [vmem:[%s301 + $0x38] sm:$0xff] %vm335, %v2038
      %2072 = vst.msk [vmem:[%s301 + $0x40] sm:$0xff] %vm335, %v2039
      %2073 = vst.msk [vmem:[%s301 + $0x48] sm:$0xff] %vm335, %v2040
      %2074 = vst.msk [vmem:[%s301 + $0x50] sm:$0xff] %vm335, %v2041
      %2075 = vst.msk [vmem:[%s301 + $0x58] sm:$0xff] %vm335, %v2042
      %2076 = vst.msk [vmem:[%s301 + $0x60] sm:$0xff] %vm335, %v2043
      %2077 = vst.msk [vmem:[%s301 + $0x68] sm:$0xff] %vm335, %v2044
      %2078 = vst.msk [vmem:[%s301 + $0x70] sm:$0xff] %vm335, %v2045
      %2079 = vst.msk [vmem:[%s301 + $0x78] sm:$0xff] %vm335, %v2046
      %s2080 = smul.u32 8, %s23
      %p2081 = scmp.lt.s32.totalorder %s22, 1
      %s2082 = scalar_select %p2081, %s22, 1
      %p2083 = scmp.lt.s32.totalorder %s2080, 15
      %s2084 = scalar_select %p2083, %s2080, 15
      %s2085 = smul.addr %s2084, 2
      %s2086 = smul.addr %s2082, 32
      %s2087 = sadd.s32 %s2085, %s2086
      %s2088 = smul.addr %s2087, 8
      %s2089 = scalar_lea.vmem %s5, %s2088
      %s2090 = smul.u32 8, %s23
      %p2091 = scmp.lt.s32.totalorder %s22, 1
      %s2092 = scalar_select %p2091, %s22, 1
      %p2093 = scmp.lt.s32.totalorder %s2090, 15
      %s2094 = scalar_select %p2093, %s2090, 15
      %s2095 = smul.addr %s2094, 2
      %s2096 = smul.addr %s2092, 32
      %s2097 = sadd.s32 %s2095, %s2096
      %s2098 = smul.addr %s2097, 8
      %s2099 = scalar_lea.vmem %s6, %s2098
      // Predicated region
      $region41: #{keyvalue_forward.1} parent=39 // pred_check
        %p2100 = pneg %p160
      $region42: #{keyvalue_forward.1} parent=39 // pred_check_branch
        %2102 = sbr.rel (%p2100) target = $region44
      $region43: #{keyvalue_forward.1} parent=39 // pred_region
        %s2103 = smul.u32 8, %s23
      $region44: #{keyvalue_forward.1} parent=39 // pred_fallthru
        _
      // Predicated region
      $region45: #{keyvalue_forward.1} parent=39 // pred_check
        %p2104 = pneg %p188
      $region46: #{keyvalue_forward.1} parent=39 // pred_check_branch
        %2106 = sbr.rel (%p2104) target = $region48
      $region47: #{keyvalue_forward.1} parent=39 // pred_region
        %s2107 = smul.u32 8, %s23
      $region48: #{keyvalue_forward.1} parent=39 // pred_fallthru
        _
    $region40: #{keyvalue_forward.1} parent=5 // pred_fallthru
      _
    %p2108 = scmp.le.s32.totalorder 2, %s13
    // Predicated region
    $region49: #{keyvalue_forward.1} parent=5 // pred_check
      %p2109 = pneg %p2108
    $region50: #{keyvalue_forward.1} parent=5 // pred_check_branch
      %2111 = sbr.rel (%p2109) target = $region52
    $region51: #{keyvalue_forward.1} parent=5 // pred_region
      %s2112 = ssub.s32 %s13, 2
      // Predicated region
      $region53: #{keyvalue_forward.1} parent=51 // pred_check
        %p2113 = pneg %p166
      $region54: #{keyvalue_forward.1} parent=51 // pred_check_branch
        %2115 = sbr.rel (%p2113) target = $region56
      $region55: #{keyvalue_forward.1} parent=51 // pred_region
        %s2116 = smul.u32 8, %s25
        %p2117 = scmp.lt.s32.totalorder %s24, 1
        %s2118 = scalar_select %p2117, %s24, 1
        %p2119 = scmp.lt.s32.totalorder %s2116, 15
        %s2120 = scalar_select %p2119, %s2116, 15
        %s2121 = smul.addr %s2120, 2
        %s2122 = smul.addr %s2118, 32
        %s2123 = sadd.s32 %s2121, %s2122
        %s2124 = smul.addr %s2123, 8
        %s2125 = scalar_lea.vmem %s5, %s2124
      $region56: #{keyvalue_forward.1} parent=51 // pred_fallthru
        _
      // Predicated region
      $region57: #{keyvalue_forward.1} parent=51 // pred_check
        %p2126 = pneg %p194
      $region58: #{keyvalue_forward.1} parent=51 // pred_check_branch
        %2128 = sbr.rel (%p2126) target = $region60
      $region59: #{keyvalue_forward.1} parent=51 // pred_region
        %s2129 = smul.u32 8, %s25
        %p2130 = scmp.lt.s32.totalorder %s24, 1
        %s2131 = scalar_select %p2130, %s24, 1
        %p2132 = scmp.lt.s32.totalorder %s2129, 15
        %s2133 = scalar_select %p2132, %s2129, 15
        %s2134 = smul.addr %s2133, 2
        %s2135 = smul.addr %s2131, 32
        %s2136 = sadd.s32 %s2134, %s2135
        %s2137 = smul.addr %s2136, 8
        %s2138 = scalar_lea.vmem %s6, %s2137
      $region60: #{keyvalue_forward.1} parent=51 // pred_fallthru
        _
    $region52: #{keyvalue_forward.1} parent=5 // pred_fallthru
      _
  $region6: #{keyvalue_forward.1} parent=0 // loop_footer
    %s17 = sadd.s32 1, %s13
  $region7: #{keyvalue_forward.1} parent=0 // loop_footer_branch
    %12 = sbr.rel target = $region3
  $region8: #{keyvalue_forward.1} parent=0 // loop_exit
    _

</llo_original>
